<compile_context>
chip_gen: v7x
topology: tpu7x:2x2x1
jax: 0.10.0
libtpu: 0.0.40
codegen_flags: <defaults>
</compile_context>

<pallas_src>
import jax
import jax.numpy as jnp
from jax.experimental import pallas as pl
from jax.experimental.pallas import tpu as pltpu

HIDDEN_SIZE = 8
TOP_K = 6
INPUT_SIZE = TOP_K * 2        # 12
OUTPUT_SIZE = 3
GATE_SIZE = 4 * HIDDEN_SIZE   # 32


def lstm_seq_kernel(x_ref, w_ih_ref, w_hh_ref, b_ref, h0_ref, c0_ref,
                    w_fc_ref, b_fc_ref,
                    y_ref, h_out_ref, c_out_ref,
                    h_all_ref):
    """Whole sequence in one invocation (no grid).

    Column layout: input columns (IN, T), h/c (H, 1), gates (4H, 1); gate-row
    order is [i, f, o, g] (reordered at pack time) so the three sigmoid gates
    form one contiguous region and their splits stay sublane-aligned.
    """
    seq_len = x_ref.shape[1]          # static Python int
    H = HIDDEN_SIZE

    # ---- Phase 1 (off the recurrence): input projection for ALL timesteps ----
    # One lane-dense MXU call; the fused bias add is folded off the serial chain.
    g_in = (jnp.dot(w_ih_ref[...], x_ref[...],
                    preferred_element_type=jnp.float32)
            + b_ref[...])                                    # (4H, T)

    # ---- Phase 2: serial recurrence (only W_hh@h + activations per step) ----
    w_hh = w_hh_ref[...]                                     # (4H, H), resident
    h = h0_ref[...]                                          # (H, 1)
    c = c0_ref[...]                                          # (H, 1)

    for t in range(seq_len):          # static trip count -> fully unrolled
        gates = (jnp.dot(w_hh, h, preferred_element_type=jnp.float32)
                 + g_in[:, t:t + 1])                         # (4H, 1), order [i, f, o, g]
        sig = jax.nn.sigmoid(gates[0:3 * H])                 # i|f|o in one contiguous region
        g = jnp.tanh(gates[3 * H:4 * H])
        i = sig[0:H]
        f = sig[H:2 * H]
        o = sig[2 * H:3 * H]
        c = f * c + i * g
        h = o * jnp.tanh(c)
        h_all_ref[:, t:t + 1] = h     # collected for the hoisted FC head (not on the chain)

    # ---- Phase 3 (off the recurrence): FC head + sigmoid for all steps at once ----
    y = (jnp.dot(w_fc_ref[...], h_all_ref[...],
                 preferred_element_type=jnp.float32)
         + b_fc_ref[...])                                    # (O, T)
    y_ref[...] = jax.nn.sigmoid(y)
    h_out_ref[...] = h
    c_out_ref[...] = c


def _lstm_seq(x_cols, w_ih, w_hh, b_cat, h0, c0, w_fc, b_fc):
    """Run T LSTM steps + FC head in a single no-grid pallas_call.

    x_cols: (INPUT_SIZE, T). All operands are whole-array VMEM blocks (DMA'd once).
    """
    T = x_cols.shape[1]
    return pl.pallas_call(
        lstm_seq_kernel,
        out_shape=(
            jax.ShapeDtypeStruct((OUTPUT_SIZE, T), jnp.float32),    # y for every step
            jax.ShapeDtypeStruct((HIDDEN_SIZE, 1), jnp.float32),    # final h
            jax.ShapeDtypeStruct((HIDDEN_SIZE, 1), jnp.float32),    # final c
        ),
        scratch_shapes=[
            pltpu.VMEM((HIDDEN_SIZE, T), jnp.float32),              # h_t columns
        ],
    )(x_cols, w_ih, w_hh, b_cat, h0, c0, w_fc, b_fc)


@jax.jit
def lstm_forward_seq(xs, packed, h0, c0):
    """T stateful forward() calls fused into one kernel launch."""
    T = xs.shape[0]
    x_cols = xs.astype(jnp.float32).reshape(T, INPUT_SIZE).T        # (IN, T)
    y, h_t, c_t = _lstm_seq(x_cols, packed["w_ih"], packed["w_hh"], packed["b_cat"],
                            h0, c0, packed["w_fc"], packed["b_fc"])
    return y.T, h_t, c_t             # (T, OUTPUT_SIZE), (H, 1), (H, 1)


@jax.jit
def lstm_model_forward(x, packed, h, c):
    """One PyTorch-module forward() call: returns (y (1,3), h' (H,1), c' (H,1))."""
    x_cols = x.astype(jnp.float32).reshape(1, INPUT_SIZE).T         # (IN, 1)
    y, h_new, c_new = _lstm_seq(x_cols, packed["w_ih"], packed["w_hh"], packed["b_cat"],
                                h, c, packed["w_fc"], packed["b_fc"])
    return y.T, h_new, c_new


def init_params(key):
    """PyTorch-style raw params: uniform(-k, k) like nn.LSTM / nn.Linear defaults."""
    k_lim = 1.0 / jnp.sqrt(jnp.float32(HIDDEN_SIZE))
    ks = jax.random.split(key, 6)
    u = lambda k, shape: jax.random.uniform(k, shape, jnp.float32, -k_lim, k_lim)
    return {
        "w_ih": u(ks[0], (GATE_SIZE, INPUT_SIZE)),     # (4H, I), row order [i, f, g, o]
        "w_hh": u(ks[1], (GATE_SIZE, HIDDEN_SIZE)),    # (4H, H)
        "b_ih": u(ks[2], (GATE_SIZE,)),
        "b_hh": u(ks[3], (GATE_SIZE,)),
        "w_fc": u(ks[4], (OUTPUT_SIZE, HIDDEN_SIZE)),  # (O, H)
        "b_fc": u(ks[5], (OUTPUT_SIZE,)),
    }


def _reorder_gates(w):
    """PyTorch row order [i, f, g, o] -> kernel order [i, f, o, g] (sigmoid gates first)."""
    H = HIDDEN_SIZE
    return jnp.concatenate([w[0:2 * H], w[3 * H:4 * H], w[2 * H:3 * H]], axis=0)


def pack_params(params):
    """One-time operand prep (not per call): fuse biases, reorder gate rows."""
    b_cat = (params["b_ih"] + params["b_hh"]).astype(jnp.float32)[:, None]   # (4H, 1)
    return {
        "w_ih": _reorder_gates(params["w_ih"].astype(jnp.float32)),   # (4H, IN)
        "w_hh": _reorder_gates(params["w_hh"].astype(jnp.float32)),   # (4H, H)
        "b_cat": _reorder_gates(b_cat),                               # (4H, 1)
        "w_fc": params["w_fc"].astype(jnp.float32),                   # (O, H)
        "b_fc": params["b_fc"].astype(jnp.float32)[:, None],          # (O, 1)
    }


def reference_step(x, params, h, c):
    """Pure-JAX reference of one PyTorch LSTM step + FC + sigmoid (row layout)."""
    x2 = x.reshape(1, -1).astype(jnp.float32)
    gates = (x2 @ params["w_ih"].T + params["b_ih"]
             + h @ params["w_hh"].T + params["b_hh"])
    i, f, g, o = jnp.split(gates, 4, axis=-1)
    i, f, o = jax.nn.sigmoid(i), jax.nn.sigmoid(f), jax.nn.sigmoid(o)
    g = jnp.tanh(g)
    c_new = f * c + i * g
    h_new = o * jnp.tanh(c_new)
    y = jax.nn.sigmoid(h_new @ params["w_fc"].T + params["b_fc"])
    return y, h_new, c_new


if __name__ == "__main__":
    key = jax.random.PRNGKey(0)
    key_p, key_x = jax.random.split(key)

    params = init_params(key_p)
    packed = pack_params(params)          # weight prep done once, outside the hot path

    SEQ_LEN = 8
    # Each step's input is anything flattening to 12 features (== top_k * 2).
    xs = jax.random.normal(key_x, (SEQ_LEN, TOP_K, 2), dtype=jnp.float32)

    # Initial hidden/cell state (the module initializes them to zeros); column layout.
    h0 = jnp.zeros((HIDDEN_SIZE, 1), jnp.float32)
    c0 = jnp.zeros((HIDDEN_SIZE, 1), jnp.float32)

    # --- multi-step path: whole sequence in ONE no-grid pallas_call ---
    ys, h_t, c_t = lstm_forward_seq(xs, packed, h0, c0)
    jax.block_until_ready((ys, h_t, c_t))

    # Check against the pure-JAX step-by-step reference.
    h_r = jnp.zeros((1, HIDDEN_SIZE), jnp.float32)
    c_r = jnp.zeros((1, HIDDEN_SIZE), jnp.float32)
    for t in range(SEQ_LEN):
        y_r, h_r, c_r = reference_step(xs[t], params, h_r, c_r)
        assert jnp.allclose(ys[t], y_r[0], atol=1e-5), (t, ys[t], y_r)
    assert jnp.allclose(h_t[:, 0], h_r[0], atol=1e-5)
    assert jnp.allclose(c_t[:, 0], c_r[0], atol=1e-5)

    # --- single-step stateful path: like calling the PyTorch module twice ---
    y1, h1, c1 = lstm_model_forward(xs[0], packed, h0, c0)
    y2, h2, c2 = lstm_model_forward(xs[1], packed, h1, c1)
    jax.block_until_ready((y2, h2, c2))

    h_r = jnp.zeros((1, HIDDEN_SIZE), jnp.float32)
    c_r = jnp.zeros((1, HIDDEN_SIZE), jnp.float32)
    y1_r, h_r, c_r = reference_step(xs[0], params, h_r, c_r)
    y2_r, h_r, c_r = reference_step(xs[1], params, h_r, c_r)
    assert jnp.allclose(y1, y1_r, atol=1e-5)
    assert jnp.allclose(y2, y2_r, atol=1e-5)
    assert jnp.allclose(h2[:, 0], h_r[0], atol=1e-5)
    assert jnp.allclose(c2[:, 0], c_r[0], atol=1e-5)

    print("KERNEL_OK")
</pallas_src>

<mosaic_0001>
module attributes {stable_mosaic.version = 11 : i64} {
  func.func @lstm_seq_kernel(%arg0: memref<12x8xf32, #tpu.memory_space<vmem>>, %arg1: memref<32x12xf32, #tpu.memory_space<vmem>>, %arg2: memref<32x8xf32, #tpu.memory_space<vmem>>, %arg3: memref<32x1xf32, #tpu.memory_space<vmem>>, %arg4: memref<8x1xf32, #tpu.memory_space<vmem>>, %arg5: memref<8x1xf32, #tpu.memory_space<vmem>>, %arg6: memref<3x8xf32, #tpu.memory_space<vmem>>, %arg7: memref<3x1xf32, #tpu.memory_space<vmem>>, %arg8: memref<3x8xf32, #tpu.memory_space<vmem>>, %arg9: memref<8x1xf32, #tpu.memory_space<vmem>>, %arg10: memref<8x1xf32, #tpu.memory_space<vmem>>, %arg11: memref<8x8xf32, #tpu.memory_space<vmem>>) attributes {dimension_semantics = [], scalar_prefetch = 0 : i64, scratch_operands = 1 : i64, tpu.core_type = #tpu.core_type<tc>} {
    %c0 = arith.constant 0 : index
    %c0_0 = arith.constant 0 : index
    %0 = vector.load %arg1[%c0, %c0_0] : memref<32x12xf32, #tpu.memory_space<vmem>>, vector<32x12xf32>
    %c0_1 = arith.constant 0 : index
    %c0_2 = arith.constant 0 : index
    %1 = vector.load %arg0[%c0_1, %c0_2] : memref<12x8xf32, #tpu.memory_space<vmem>>, vector<12x8xf32>
    %cst = arith.constant dense<0.000000e+00> : vector<32x8xf32>
    %2 = tpu.matmul %0, %1, %cst {dimension_numbers = #tpu.dot_dimension_numbers<[1], [0], [0], [1], [0, 0, 1, 1], [], []>} : vector<32x12xf32>, vector<12x8xf32>, vector<32x8xf32> -> vector<32x8xf32>
    %c0_3 = arith.constant 0 : index
    %c0_4 = arith.constant 0 : index
    %3 = vector.load %arg3[%c0_3, %c0_4] : memref<32x1xf32, #tpu.memory_space<vmem>>, vector<32x1xf32>
    %4 = vector.broadcast %3 : vector<32x1xf32> to vector<32x8xf32>
    %5 = arith.addf %2, %4 : vector<32x8xf32>
    %c0_5 = arith.constant 0 : index
    %c0_6 = arith.constant 0 : index
    %6 = vector.load %arg2[%c0_5, %c0_6] : memref<32x8xf32, #tpu.memory_space<vmem>>, vector<32x8xf32>
    %c0_7 = arith.constant 0 : index
    %c0_8 = arith.constant 0 : index
    %7 = vector.load %arg4[%c0_7, %c0_8] : memref<8x1xf32, #tpu.memory_space<vmem>>, vector<8x1xf32>
    %c0_9 = arith.constant 0 : index
    %c0_10 = arith.constant 0 : index
    %8 = vector.load %arg5[%c0_9, %c0_10] : memref<8x1xf32, #tpu.memory_space<vmem>>, vector<8x1xf32>
    %cst_11 = arith.constant dense<0.000000e+00> : vector<32x1xf32>
    %9 = tpu.matmul %6, %7, %cst_11 {dimension_numbers = #tpu.dot_dimension_numbers<[1], [0], [0], [1], [0, 0, 1, 1], [], []>} : vector<32x8xf32>, vector<8x1xf32>, vector<32x1xf32> -> vector<32x1xf32>
    %10 = vector.extract_strided_slice %5 {offsets = [0, 0], sizes = [32, 1], strides = [1, 1]} : vector<32x8xf32> to vector<32x1xf32>
    %11 = arith.addf %9, %10 : vector<32x1xf32>
    %12 = vector.extract_strided_slice %11 {offsets = [0, 0], sizes = [24, 1], strides = [1, 1]} : vector<32x1xf32> to vector<24x1xf32>
    %13 = arith.negf %12 : vector<24x1xf32>
    %14 = math.exp %13 : vector<24x1xf32>
    %cst_12 = arith.constant 1.000000e+00 : f32
    %15 = vector.broadcast %cst_12 : f32 to vector<24x1xf32>
    %16 = arith.addf %15, %14 : vector<24x1xf32>
    %17 = arith.divf %15, %16 : vector<24x1xf32>
    %18 = vector.extract_strided_slice %11 {offsets = [24, 0], sizes = [8, 1], strides = [1, 1]} : vector<32x1xf32> to vector<8x1xf32>
    %19 = math.tanh %18 : vector<8x1xf32>
    %20 = vector.extract_strided_slice %17 {offsets = [0, 0], sizes = [8, 1], strides = [1, 1]} : vector<24x1xf32> to vector<8x1xf32>
    %21 = vector.extract_strided_slice %17 {offsets = [8, 0], sizes = [8, 1], strides = [1, 1]} : vector<24x1xf32> to vector<8x1xf32>
    %22 = vector.extract_strided_slice %17 {offsets = [16, 0], sizes = [8, 1], strides = [1, 1]} : vector<24x1xf32> to vector<8x1xf32>
    %23 = arith.mulf %21, %8 : vector<8x1xf32>
    %24 = arith.mulf %20, %19 : vector<8x1xf32>
    %25 = arith.addf %23, %24 : vector<8x1xf32>
    %26 = math.tanh %25 : vector<8x1xf32>
    %27 = arith.mulf %22, %26 : vector<8x1xf32>
    %c0_13 = arith.constant 0 : index
    %c0_14 = arith.constant 0 : index
    %28 = vector.load %arg11[%c0_13, %c0_14] : memref<8x8xf32, #tpu.memory_space<vmem>>, vector<8x1xf32>
    tpu.vector_store %arg11[%c0_13, %c0_14], %27 {strides = array<i32>} : memref<8x8xf32, #tpu.memory_space<vmem>>, vector<8x1xf32>,
    %cst_15 = arith.constant dense<0.000000e+00> : vector<32x1xf32>
    %29 = tpu.matmul %6, %27, %cst_15 {dimension_numbers = #tpu.dot_dimension_numbers<[1], [0], [0], [1], [0, 0, 1, 1], [], []>} : vector<32x8xf32>, vector<8x1xf32>, vector<32x1xf32> -> vector<32x1xf32>
    %30 = vector.extract_strided_slice %5 {offsets = [0, 1], sizes = [32, 1], strides = [1, 1]} : vector<32x8xf32> to vector<32x1xf32>
    %31 = arith.addf %29, %30 : vector<32x1xf32>
    %32 = vector.extract_strided_slice %31 {offsets = [0, 0], sizes = [24, 1], strides = [1, 1]} : vector<32x1xf32> to vector<24x1xf32>
    %33 = arith.negf %32 : vector<24x1xf32>
    %34 = math.exp %33 : vector<24x1xf32>
    %cst_16 = arith.constant 1.000000e+00 : f32
    %35 = vector.broadcast %cst_16 : f32 to vector<24x1xf32>
    %36 = arith.addf %35, %34 : vector<24x1xf32>
    %37 = arith.divf %35, %36 : vector<24x1xf32>
    %38 = vector.extract_strided_slice %31 {offsets = [24, 0], sizes = [8, 1], strides = [1, 1]} : vector<32x1xf32> to vector<8x1xf32>
    %39 = math.tanh %38 : vector<8x1xf32>
    %40 = vector.extract_strided_slice %37 {offsets = [0, 0], sizes = [8, 1], strides = [1, 1]} : vector<24x1xf32> to vector<8x1xf32>
    %41 = vector.extract_strided_slice %37 {offsets = [8, 0], sizes = [8, 1], strides = [1, 1]} : vector<24x1xf32> to vector<8x1xf32>
    %42 = vector.extract_strided_slice %37 {offsets = [16, 0], sizes = [8, 1], strides = [1, 1]} : vector<24x1xf32> to vector<8x1xf32>
    %43 = arith.mulf %41, %25 : vector<8x1xf32>
    %44 = arith.mulf %40, %39 : vector<8x1xf32>
    %45 = arith.addf %43, %44 : vector<8x1xf32>
    %46 = math.tanh %45 : vector<8x1xf32>
    %47 = arith.mulf %42, %46 : vector<8x1xf32>
    %c0_17 = arith.constant 0 : index
    %c1 = arith.constant 1 : index
    %48 = vector.load %arg11[%c0_17, %c1] : memref<8x8xf32, #tpu.memory_space<vmem>>, vector<8x1xf32>
    tpu.vector_store %arg11[%c0_17, %c1], %47 {strides = array<i32>} : memref<8x8xf32, #tpu.memory_space<vmem>>, vector<8x1xf32>,
    %cst_18 = arith.constant dense<0.000000e+00> : vector<32x1xf32>
    %49 = tpu.matmul %6, %47, %cst_18 {dimension_numbers = #tpu.dot_dimension_numbers<[1], [0], [0], [1], [0, 0, 1, 1], [], []>} : vector<32x8xf32>, vector<8x1xf32>, vector<32x1xf32> -> vector<32x1xf32>
    %50 = vector.extract_strided_slice %5 {offsets = [0, 2], sizes = [32, 1], strides = [1, 1]} : vector<32x8xf32> to vector<32x1xf32>
    %51 = arith.addf %49, %50 : vector<32x1xf32>
    %52 = vector.extract_strided_slice %51 {offsets = [0, 0], sizes = [24, 1], strides = [1, 1]} : vector<32x1xf32> to vector<24x1xf32>
    %53 = arith.negf %52 : vector<24x1xf32>
    %54 = math.exp %53 : vector<24x1xf32>
    %cst_19 = arith.constant 1.000000e+00 : f32
    %55 = vector.broadcast %cst_19 : f32 to vector<24x1xf32>
    %56 = arith.addf %55, %54 : vector<24x1xf32>
    %57 = arith.divf %55, %56 : vector<24x1xf32>
    %58 = vector.extract_strided_slice %51 {offsets = [24, 0], sizes = [8, 1], strides = [1, 1]} : vector<32x1xf32> to vector<8x1xf32>
    %59 = math.tanh %58 : vector<8x1xf32>
    %60 = vector.extract_strided_slice %57 {offsets = [0, 0], sizes = [8, 1], strides = [1, 1]} : vector<24x1xf32> to vector<8x1xf32>
    %61 = vector.extract_strided_slice %57 {offsets = [8, 0], sizes = [8, 1], strides = [1, 1]} : vector<24x1xf32> to vector<8x1xf32>
    %62 = vector.extract_strided_slice %57 {offsets = [16, 0], sizes = [8, 1], strides = [1, 1]} : vector<24x1xf32> to vector<8x1xf32>
    %63 = arith.mulf %61, %45 : vector<8x1xf32>
    %64 = arith.mulf %60, %59 : vector<8x1xf32>
    %65 = arith.addf %63, %64 : vector<8x1xf32>
    %66 = math.tanh %65 : vector<8x1xf32>
    %67 = arith.mulf %62, %66 : vector<8x1xf32>
    %c0_20 = arith.constant 0 : index
    %c2 = arith.constant 2 : index
    %68 = vector.load %arg11[%c0_20, %c2] : memref<8x8xf32, #tpu.memory_space<vmem>>, vector<8x1xf32>
    tpu.vector_store %arg11[%c0_20, %c2], %67 {strides = array<i32>} : memref<8x8xf32, #tpu.memory_space<vmem>>, vector<8x1xf32>,
    %cst_21 = arith.constant dense<0.000000e+00> : vector<32x1xf32>
    %69 = tpu.matmul %6, %67, %cst_21 {dimension_numbers = #tpu.dot_dimension_numbers<[1], [0], [0], [1], [0, 0, 1, 1], [], []>} : vector<32x8xf32>, vector<8x1xf32>, vector<32x1xf32> -> vector<32x1xf32>
    %70 = vector.extract_strided_slice %5 {offsets = [0, 3], sizes = [32, 1], strides = [1, 1]} : vector<32x8xf32> to vector<32x1xf32>
    %71 = arith.addf %69, %70 : vector<32x1xf32>
    %72 = vector.extract_strided_slice %71 {offsets = [0, 0], sizes = [24, 1], strides = [1, 1]} : vector<32x1xf32> to vector<24x1xf32>
    %73 = arith.negf %72 : vector<24x1xf32>
    %74 = math.exp %73 : vector<24x1xf32>
    %cst_22 = arith.constant 1.000000e+00 : f32
    %75 = vector.broadcast %cst_22 : f32 to vector<24x1xf32>
    %76 = arith.addf %75, %74 : vector<24x1xf32>
    %77 = arith.divf %75, %76 : vector<24x1xf32>
    %78 = vector.extract_strided_slice %71 {offsets = [24, 0], sizes = [8, 1], strides = [1, 1]} : vector<32x1xf32> to vector<8x1xf32>
    %79 = math.tanh %78 : vector<8x1xf32>
    %80 = vector.extract_strided_slice %77 {offsets = [0, 0], sizes = [8, 1], strides = [1, 1]} : vector<24x1xf32> to vector<8x1xf32>
    %81 = vector.extract_strided_slice %77 {offsets = [8, 0], sizes = [8, 1], strides = [1, 1]} : vector<24x1xf32> to vector<8x1xf32>
    %82 = vector.extract_strided_slice %77 {offsets = [16, 0], sizes = [8, 1], strides = [1, 1]} : vector<24x1xf32> to vector<8x1xf32>
    %83 = arith.mulf %81, %65 : vector<8x1xf32>
    %84 = arith.mulf %80, %79 : vector<8x1xf32>
    %85 = arith.addf %83, %84 : vector<8x1xf32>
    %86 = math.tanh %85 : vector<8x1xf32>
    %87 = arith.mulf %82, %86 : vector<8x1xf32>
    %c0_23 = arith.constant 0 : index
    %c3 = arith.constant 3 : index
    %88 = vector.load %arg11[%c0_23, %c3] : memref<8x8xf32, #tpu.memory_space<vmem>>, vector<8x1xf32>
    tpu.vector_store %arg11[%c0_23, %c3], %87 {strides = array<i32>} : memref<8x8xf32, #tpu.memory_space<vmem>>, vector<8x1xf32>,
    %cst_24 = arith.constant dense<0.000000e+00> : vector<32x1xf32>
    %89 = tpu.matmul %6, %87, %cst_24 {dimension_numbers = #tpu.dot_dimension_numbers<[1], [0], [0], [1], [0, 0, 1, 1], [], []>} : vector<32x8xf32>, vector<8x1xf32>, vector<32x1xf32> -> vector<32x1xf32>
    %90 = vector.extract_strided_slice %5 {offsets = [0, 4], sizes = [32, 1], strides = [1, 1]} : vector<32x8xf32> to vector<32x1xf32>
    %91 = arith.addf %89, %90 : vector<32x1xf32>
    %92 = vector.extract_strided_slice %91 {offsets = [0, 0], sizes = [24, 1], strides = [1, 1]} : vector<32x1xf32> to vector<24x1xf32>
    %93 = arith.negf %92 : vector<24x1xf32>
    %94 = math.exp %93 : vector<24x1xf32>
    %cst_25 = arith.constant 1.000000e+00 : f32
    %95 = vector.broadcast %cst_25 : f32 to vector<24x1xf32>
    %96 = arith.addf %95, %94 : vector<24x1xf32>
    %97 = arith.divf %95, %96 : vector<24x1xf32>
    %98 = vector.extract_strided_slice %91 {offsets = [24, 0], sizes = [8, 1], strides = [1, 1]} : vector<32x1xf32> to vector<8x1xf32>
    %99 = math.tanh %98 : vector<8x1xf32>
    %100 = vector.extract_strided_slice %97 {offsets = [0, 0], sizes = [8, 1], strides = [1, 1]} : vector<24x1xf32> to vector<8x1xf32>
    %101 = vector.extract_strided_slice %97 {offsets = [8, 0], sizes = [8, 1], strides = [1, 1]} : vector<24x1xf32> to vector<8x1xf32>
    %102 = vector.extract_strided_slice %97 {offsets = [16, 0], sizes = [8, 1], strides = [1, 1]} : vector<24x1xf32> to vector<8x1xf32>
    %103 = arith.mulf %101, %85 : vector<8x1xf32>
    %104 = arith.mulf %100, %99 : vector<8x1xf32>
    %105 = arith.addf %103, %104 : vector<8x1xf32>
    %106 = math.tanh %105 : vector<8x1xf32>
    %107 = arith.mulf %102, %106 : vector<8x1xf32>
    %c0_26 = arith.constant 0 : index
    %c4 = arith.constant 4 : index
    %108 = vector.load %arg11[%c0_26, %c4] : memref<8x8xf32, #tpu.memory_space<vmem>>, vector<8x1xf32>
    tpu.vector_store %arg11[%c0_26, %c4], %107 {strides = array<i32>} : memref<8x8xf32, #tpu.memory_space<vmem>>, vector<8x1xf32>,
    %cst_27 = arith.constant dense<0.000000e+00> : vector<32x1xf32>
    %109 = tpu.matmul %6, %107, %cst_27 {dimension_numbers = #tpu.dot_dimension_numbers<[1], [0], [0], [1], [0, 0, 1, 1], [], []>} : vector<32x8xf32>, vector<8x1xf32>, vector<32x1xf32> -> vector<32x1xf32>
    %110 = vector.extract_strided_slice %5 {offsets = [0, 5], sizes = [32, 1], strides = [1, 1]} : vector<32x8xf32> to vector<32x1xf32>
    %111 = arith.addf %109, %110 : vector<32x1xf32>
    %112 = vector.extract_strided_slice %111 {offsets = [0, 0], sizes = [24, 1], strides = [1, 1]} : vector<32x1xf32> to vector<24x1xf32>
    %113 = arith.negf %112 : vector<24x1xf32>
    %114 = math.exp %113 : vector<24x1xf32>
    %cst_28 = arith.constant 1.000000e+00 : f32
    %115 = vector.broadcast %cst_28 : f32 to vector<24x1xf32>
    %116 = arith.addf %115, %114 : vector<24x1xf32>
    %117 = arith.divf %115, %116 : vector<24x1xf32>
    %118 = vector.extract_strided_slice %111 {offsets = [24, 0], sizes = [8, 1], strides = [1, 1]} : vector<32x1xf32> to vector<8x1xf32>
    %119 = math.tanh %118 : vector<8x1xf32>
    %120 = vector.extract_strided_slice %117 {offsets = [0, 0], sizes = [8, 1], strides = [1, 1]} : vector<24x1xf32> to vector<8x1xf32>
    %121 = vector.extract_strided_slice %117 {offsets = [8, 0], sizes = [8, 1], strides = [1, 1]} : vector<24x1xf32> to vector<8x1xf32>
    %122 = vector.extract_strided_slice %117 {offsets = [16, 0], sizes = [8, 1], strides = [1, 1]} : vector<24x1xf32> to vector<8x1xf32>
    %123 = arith.mulf %121, %105 : vector<8x1xf32>
    %124 = arith.mulf %120, %119 : vector<8x1xf32>
    %125 = arith.addf %123, %124 : vector<8x1xf32>
    %126 = math.tanh %125 : vector<8x1xf32>
    %127 = arith.mulf %122, %126 : vector<8x1xf32>
    %c0_29 = arith.constant 0 : index
    %c5 = arith.constant 5 : index
    %128 = vector.load %arg11[%c0_29, %c5] : memref<8x8xf32, #tpu.memory_space<vmem>>, vector<8x1xf32>
    tpu.vector_store %arg11[%c0_29, %c5], %127 {strides = array<i32>} : memref<8x8xf32, #tpu.memory_space<vmem>>, vector<8x1xf32>,
    %cst_30 = arith.constant dense<0.000000e+00> : vector<32x1xf32>
    %129 = tpu.matmul %6, %127, %cst_30 {dimension_numbers = #tpu.dot_dimension_numbers<[1], [0], [0], [1], [0, 0, 1, 1], [], []>} : vector<32x8xf32>, vector<8x1xf32>, vector<32x1xf32> -> vector<32x1xf32>
    %130 = vector.extract_strided_slice %5 {offsets = [0, 6], sizes = [32, 1], strides = [1, 1]} : vector<32x8xf32> to vector<32x1xf32>
    %131 = arith.addf %129, %130 : vector<32x1xf32>
    %132 = vector.extract_strided_slice %131 {offsets = [0, 0], sizes = [24, 1], strides = [1, 1]} : vector<32x1xf32> to vector<24x1xf32>
    %133 = arith.negf %132 : vector<24x1xf32>
    %134 = math.exp %133 : vector<24x1xf32>
    %cst_31 = arith.constant 1.000000e+00 : f32
    %135 = vector.broadcast %cst_31 : f32 to vector<24x1xf32>
    %136 = arith.addf %135, %134 : vector<24x1xf32>
    %137 = arith.divf %135, %136 : vector<24x1xf32>
    %138 = vector.extract_strided_slice %131 {offsets = [24, 0], sizes = [8, 1], strides = [1, 1]} : vector<32x1xf32> to vector<8x1xf32>
    %139 = math.tanh %138 : vector<8x1xf32>
    %140 = vector.extract_strided_slice %137 {offsets = [0, 0], sizes = [8, 1], strides = [1, 1]} : vector<24x1xf32> to vector<8x1xf32>
    %141 = vector.extract_strided_slice %137 {offsets = [8, 0], sizes = [8, 1], strides = [1, 1]} : vector<24x1xf32> to vector<8x1xf32>
    %142 = vector.extract_strided_slice %137 {offsets = [16, 0], sizes = [8, 1], strides = [1, 1]} : vector<24x1xf32> to vector<8x1xf32>
    %143 = arith.mulf %141, %125 : vector<8x1xf32>
    %144 = arith.mulf %140, %139 : vector<8x1xf32>
    %145 = arith.addf %143, %144 : vector<8x1xf32>
    %146 = math.tanh %145 : vector<8x1xf32>
    %147 = arith.mulf %142, %146 : vector<8x1xf32>
    %c0_32 = arith.constant 0 : index
    %c6 = arith.constant 6 : index
    %148 = vector.load %arg11[%c0_32, %c6] : memref<8x8xf32, #tpu.memory_space<vmem>>, vector<8x1xf32>
    tpu.vector_store %arg11[%c0_32, %c6], %147 {strides = array<i32>} : memref<8x8xf32, #tpu.memory_space<vmem>>, vector<8x1xf32>,
    %cst_33 = arith.constant dense<0.000000e+00> : vector<32x1xf32>
    %149 = tpu.matmul %6, %147, %cst_33 {dimension_numbers = #tpu.dot_dimension_numbers<[1], [0], [0], [1], [0, 0, 1, 1], [], []>} : vector<32x8xf32>, vector<8x1xf32>, vector<32x1xf32> -> vector<32x1xf32>
    %150 = vector.extract_strided_slice %5 {offsets = [0, 7], sizes = [32, 1], strides = [1, 1]} : vector<32x8xf32> to vector<32x1xf32>
    %151 = arith.addf %149, %150 : vector<32x1xf32>
    %152 = vector.extract_strided_slice %151 {offsets = [0, 0], sizes = [24, 1], strides = [1, 1]} : vector<32x1xf32> to vector<24x1xf32>
    %153 = arith.negf %152 : vector<24x1xf32>
    %154 = math.exp %153 : vector<24x1xf32>
    %cst_34 = arith.constant 1.000000e+00 : f32
    %155 = vector.broadcast %cst_34 : f32 to vector<24x1xf32>
    %156 = arith.addf %155, %154 : vector<24x1xf32>
    %157 = arith.divf %155, %156 : vector<24x1xf32>
    %158 = vector.extract_strided_slice %151 {offsets = [24, 0], sizes = [8, 1], strides = [1, 1]} : vector<32x1xf32> to vector<8x1xf32>
    %159 = math.tanh %158 : vector<8x1xf32>
    %160 = vector.extract_strided_slice %157 {offsets = [0, 0], sizes = [8, 1], strides = [1, 1]} : vector<24x1xf32> to vector<8x1xf32>
    %161 = vector.extract_strided_slice %157 {offsets = [8, 0], sizes = [8, 1], strides = [1, 1]} : vector<24x1xf32> to vector<8x1xf32>
    %162 = vector.extract_strided_slice %157 {offsets = [16, 0], sizes = [8, 1], strides = [1, 1]} : vector<24x1xf32> to vector<8x1xf32>
    %163 = arith.mulf %161, %145 : vector<8x1xf32>
    %164 = arith.mulf %160, %159 : vector<8x1xf32>
    %165 = arith.addf %163, %164 : vector<8x1xf32>
    %166 = math.tanh %165 : vector<8x1xf32>
    %167 = arith.mulf %162, %166 : vector<8x1xf32>
    %c0_35 = arith.constant 0 : index
    %c7 = arith.constant 7 : index
    %168 = vector.load %arg11[%c0_35, %c7] : memref<8x8xf32, #tpu.memory_space<vmem>>, vector<8x1xf32>
    tpu.vector_store %arg11[%c0_35, %c7], %167 {strides = array<i32>} : memref<8x8xf32, #tpu.memory_space<vmem>>, vector<8x1xf32>,
    %c0_36 = arith.constant 0 : index
    %c0_37 = arith.constant 0 : index
    %169 = vector.load %arg6[%c0_36, %c0_37] : memref<3x8xf32, #tpu.memory_space<vmem>>, vector<3x8xf32>
    %c0_38 = arith.constant 0 : index
    %c0_39 = arith.constant 0 : index
    %170 = vector.load %arg11[%c0_38, %c0_39] : memref<8x8xf32, #tpu.memory_space<vmem>>, vector<8x8xf32>
    %cst_40 = arith.constant dense<0.000000e+00> : vector<3x8xf32>
    %171 = tpu.matmul %169, %170, %cst_40 {dimension_numbers = #tpu.dot_dimension_numbers<[1], [0], [0], [1], [0, 0, 1, 1], [], []>} : vector<3x8xf32>, vector<8x8xf32>, vector<3x8xf32> -> vector<3x8xf32>
    %c0_41 = arith.constant 0 : index
    %c0_42 = arith.constant 0 : index
    %172 = vector.load %arg7[%c0_41, %c0_42] : memref<3x1xf32, #tpu.memory_space<vmem>>, vector<3x1xf32>
    %173 = vector.broadcast %172 : vector<3x1xf32> to vector<3x8xf32>
    %174 = arith.addf %171, %173 : vector<3x8xf32>
    %175 = arith.negf %174 : vector<3x8xf32>
    %176 = math.exp %175 : vector<3x8xf32>
    %cst_43 = arith.constant 1.000000e+00 : f32
    %177 = vector.broadcast %cst_43 : f32 to vector<3x8xf32>
    %178 = arith.addf %177, %176 : vector<3x8xf32>
    %179 = arith.divf %177, %178 : vector<3x8xf32>
    %c0_44 = arith.constant 0 : index
    %c0_45 = arith.constant 0 : index
    %180 = vector.load %arg8[%c0_44, %c0_45] : memref<3x8xf32, #tpu.memory_space<vmem>>, vector<3x8xf32>
    tpu.vector_store %arg8[%c0_44, %c0_45], %179 {strides = array<i32>} : memref<3x8xf32, #tpu.memory_space<vmem>>, vector<3x8xf32>,
    %c0_46 = arith.constant 0 : index
    %c0_47 = arith.constant 0 : index
    %181 = vector.load %arg9[%c0_46, %c0_47] : memref<8x1xf32, #tpu.memory_space<vmem>>, vector<8x1xf32>
    tpu.vector_store %arg9[%c0_46, %c0_47], %167 {strides = array<i32>} : memref<8x1xf32, #tpu.memory_space<vmem>>, vector<8x1xf32>,
    %c0_48 = arith.constant 0 : index
    %c0_49 = arith.constant 0 : index
    %182 = vector.load %arg10[%c0_48, %c0_49] : memref<8x1xf32, #tpu.memory_space<vmem>>, vector<8x1xf32>
    tpu.vector_store %arg10[%c0_48, %c0_49], %165 {strides = array<i32>} : memref<8x1xf32, #tpu.memory_space<vmem>>, vector<8x1xf32>,
    return
  }
}

</mosaic_0001>

<llo_original>
// kernel: lstm_forward_seq.1
$region0: #{lstm_forward_seq.1}
  #allocation0 [shape = 'u32[]', space=smem, size = 0x4, offset = 0x4, fixed_abs, tag = 'smem constant byte address 0x4 - core index']
  #allocation1 [shape = 'u32[144,128]{1,0:T(1,128)}', space=vmem, size = 0x12000, scoped, tag = 'internal scratch']
  #allocation2 [shape = 'f32[8,8]{1,0:T(8,128)}', space=vmem, size = 0x1000, scoped, tag = 'scratch operand']
  %s0 = inlined_call_operand.vmem [shape: f32[12,8], index: 0, kind: input, shape index: {}]
  %s1 = inlined_call_operand.vmem [shape: f32[32,12], index: 1, kind: input, shape index: {}]
  %s2 = inlined_call_operand.vmem [shape: f32[32,8], index: 2, kind: input, shape index: {}]
  %s3 = inlined_call_operand.vmem [shape: f32[32,1], index: 3, kind: input, shape index: {}]
  %s4 = inlined_call_operand.vmem [shape: f32[8,1], index: 4, kind: input, shape index: {}]
  %s5 = inlined_call_operand.vmem [shape: f32[8,1], index: 5, kind: input, shape index: {}]
  %s6 = inlined_call_operand.vmem [shape: f32[3,8], index: 6, kind: input, shape index: {}]
  %s7 = inlined_call_operand.vmem [shape: f32[3,1], index: 7, kind: input, shape index: {}]
  %s8 = inlined_call_operand.hbm [shape: f32[3,8], index: 8, kind: output, shape index: {0}]
  %s9 = inlined_call_operand.vmem [shape: f32[8,1], index: 9, kind: output, shape index: {1}]
  %s10 = inlined_call_operand.vmem [shape: f32[8,1], index: 10, kind: output, shape index: {2}]
  %11 = xla_tuple %s8, %s9, %s10
  %s12 = sld [smem:[#allocation0]]
  $region58: #{lstm_forward_seq.1} parent=0
    _
  %s14 = ssub.s32 1, %s12
  %s15 = scalar_select 0, %s14, %s12
  $region1: #{lstm_forward_seq.1} parent=0
    #allocation3 [shape = 'u8[2048]{0}', space=vmem, size = 0x800, scoped, tag = 'output window, operand 0, single buffered']
    #allocation4 [shape = 's32[1]{0}', space=sflag, size = 0x4, scoped, tag = 'scoped memory for lstm_forward_seq.1']
    %16 = vsyncpa [#allocation4], 0
    // Predicated region
    $region2: #{lstm_forward_seq.1} parent=1 // pred_check
      _
    $region3: #{lstm_forward_seq.1} parent=1 // pred_check_branch
      %18 = sbr.rel (0) target = $region5
    $region4: #{lstm_forward_seq.1} parent=1 // pred_region
      _
    $region5: #{lstm_forward_seq.1} parent=1 // pred_fallthru
      _
    // Predicated region
    $region6: #{lstm_forward_seq.1} parent=1 // pred_check
      _
    $region7: #{lstm_forward_seq.1} parent=1 // pred_check_branch
      %20 = sbr.rel (0) target = $region9
    $region8: #{lstm_forward_seq.1} parent=1 // pred_region
      _
    $region9: #{lstm_forward_seq.1} parent=1 // pred_fallthru
      _
    // Predicated region
    $region10: #{lstm_forward_seq.1} parent=1 // pred_check
      _
    $region11: #{lstm_forward_seq.1} parent=1 // pred_check_branch
      %22 = sbr.rel (0) target = $region13
    $region12: #{lstm_forward_seq.1} parent=1 // pred_region
      _
    $region13: #{lstm_forward_seq.1} parent=1 // pred_fallthru
      _
    // Predicated region
    $region14: #{lstm_forward_seq.1} parent=1 // pred_check
      _
    $region15: #{lstm_forward_seq.1} parent=1 // pred_check_branch
      %24 = sbr.rel (0) target = $region17
    $region16: #{lstm_forward_seq.1} parent=1 // pred_region
      _
    $region17: #{lstm_forward_seq.1} parent=1 // pred_fallthru
      _
    // Predicated region
    $region18: #{lstm_forward_seq.1} parent=1 // pred_check
      _
    $region19: #{lstm_forward_seq.1} parent=1 // pred_check_branch
      %26 = sbr.rel (0) target = $region21
    $region20: #{lstm_forward_seq.1} parent=1 // pred_region
      _
    $region21: #{lstm_forward_seq.1} parent=1 // pred_fallthru
      _
    // Predicated region
    $region22: #{lstm_forward_seq.1} parent=1 // pred_check
      _
    $region23: #{lstm_forward_seq.1} parent=1 // pred_check_branch
      %28 = sbr.rel (0) target = $region25
    $region24: #{lstm_forward_seq.1} parent=1 // pred_region
      _
    $region25: #{lstm_forward_seq.1} parent=1 // pred_fallthru
      _
    // Predicated region
    $region26: #{lstm_forward_seq.1} parent=1 // pred_check
      _
    $region27: #{lstm_forward_seq.1} parent=1 // pred_check_branch
      %30 = sbr.rel (0) target = $region29
    $region28: #{lstm_forward_seq.1} parent=1 // pred_region
      _
    $region29: #{lstm_forward_seq.1} parent=1 // pred_fallthru
      _
    // Predicated region
    $region30: #{lstm_forward_seq.1} parent=1 // pred_check
      _
    $region31: #{lstm_forward_seq.1} parent=1 // pred_check_branch
      %32 = sbr.rel (0) target = $region33
    $region32: #{lstm_forward_seq.1} parent=1 // pred_region
      _
    $region33: #{lstm_forward_seq.1} parent=1 // pred_fallthru
      _
    %v33 = vld [vmem:[%s1] sm:$0xff]
    %v34 = vld [vmem:[%s1 + $0x8] sm:$0xff]
    %v35 = vld [vmem:[%s1 + $0x10] sm:$0xff]
    %v36 = vld [vmem:[%s1 + $0x18] sm:$0xff]
    %v37 = vld [vmem:[%s0] sm:$0xff]
    %v38 = vld [vmem:[%s0 + $0x8] sm:$0xf]
    %v39 = vld [vmem:[%s3] sm:$0xff]
    %v40 = vld [vmem:[%s3 + $0x8] sm:$0xff]
    %v41 = vld [vmem:[%s3 + $0x10] sm:$0xff]
    %v42 = vld [vmem:[%s3 + $0x18] sm:$0xff]
    %44 = vset.pattern.permute.xlu0 0
    %45 = vperm.xlu0 %44, %v39
    %v46 = vpop.permute.xlu0 %45
    %49 = vset.pattern.permute.xlu0 0
    %50 = vperm.xlu0 %49, %v40
    %v51 = vpop.permute.xlu0 %50
    %54 = vset.pattern.permute.xlu0 0
    %55 = vperm.xlu0 %54, %v41
    %v56 = vpop.permute.xlu0 %55
    %59 = vset.pattern.permute.xlu0 0
    %60 = vperm.xlu0 %59, %v42
    %v61 = vpop.permute.xlu0 %60
    %vm63 = vcmask 97280
    %v65 = vsel %vm63, %v33, 0
    %v68 = vsel %vm63, %v34, 0
    %v71 = vsel %vm63, %v35, 0
    %v74 = vsel %vm63, %v36, 0
    %vm76 = vcmask 1043456
    %v78 = vsel %vm76, %v38, 0
    %80 = vmatprep.subr.mxu0 0.0
    %81 = vmatpush1.msra.mxu0 %v37
    %82 = vmatprep.subr.mxu0 0.0
    %83 = vmatpush1.msra.mxu0 %v78
    %84 = vmatprep.subr.mxu0 0.0
    %85 = vmatpush1.msra.mxu0 0.0
    %86 = vmatprep.subr.mxu0 0.0
    %87 = vmatpush1.msra.mxu0 0.0
    %88 = vmatprep.subr.mxu0 0.0
    %89 = vmatpush1.msra.mxu0 0.0
    %90 = vmatprep.subr.mxu0 0.0
    %91 = vmatpush1.msra.mxu0 0.0
    %92 = vmatprep.subr.mxu0 0.0
    %93 = vmatpush1.msra.mxu0 0.0
    %94 = vmatprep.subr.mxu0 0.0
    %95 = vmatpush1.msra.mxu0 0.0
    %96 = vmatprep.subr.mxu0 0.0
    %97 = vmatpush1.msra.mxu0 0.0
    %98 = vmatprep.subr.mxu0 0.0
    %99 = vmatpush1.msra.mxu0 0.0
    %100 = vmatprep.subr.mxu0 0.0
    %101 = vmatpush1.msra.mxu0 0.0
    %102 = vmatprep.subr.mxu0 0.0
    %103 = vmatpush1.msra.mxu0 0.0
    %104 = vmatprep.subr.mxu0 0.0
    %105 = vmatpush1.msra.mxu0 0.0
    %106 = vmatprep.subr.mxu0 0.0
    %107 = vmatpush1.msra.mxu0 0.0
    %108 = vmatprep.subr.mxu0 0.0
    %109 = vmatpush1.msra.mxu0 0.0
    %110 = vmatprep.subr.mxu0 0.0
    %111 = vmatpush1.msra.mxu0 0.0
    %112 = vmatprep.subr.mxu0 0.0
    %113 = vmatpush1.msra.mxu0 0.0
    %114 = vmatprep.subr.mxu0 0.0
    %115 = vmatpush1.msra.mxu0 0.0
    %116 = vmatprep.subr.mxu0 0.0
    %117 = vmatpush1.msra.mxu0 0.0
    %118 = vmatprep.subr.mxu0 0.0
    %119 = vmatpush1.msra.mxu0 0.0
    %120 = vmatprep.subr.mxu0 0.0
    %121 = vmatpush1.msra.mxu0 0.0
    %122 = vmatprep.subr.mxu0 0.0
    %123 = vmatpush1.msra.mxu0 0.0
    %124 = vmatprep.subr.mxu0 0.0
    %125 = vmatpush1.msra.mxu0 0.0
    %126 = vmatprep.subr.mxu0 0.0
    %127 = vmatpush1.msra.mxu0 0.0
    %128 = vmatprep.subr.mxu0 0.0
    %129 = vmatpush1.msra.mxu0 0.0
    %130 = vmatprep.subr.mxu0 0.0
    %131 = vmatpush1.msra.mxu0 0.0
    %132 = vmatprep.subr.mxu0 0.0
    %133 = vmatpush1.msra.mxu0 0.0
    %134 = vmatprep.subr.mxu0 0.0
    %135 = vmatpush1.msra.mxu0 0.0
    %136 = vmatprep.subr.mxu0 0.0
    %137 = vmatpush1.msra.mxu0 0.0
    %138 = vmatprep.subr.mxu0 0.0
    %139 = vmatpush1.msra.mxu0 0.0
    %140 = vmatprep.subr.mxu0 0.0
    %141 = vmatpush1.msra.mxu0 0.0
    %142 = vmatprep.subr.mxu0 0.0
    %143 = vmatpush1.msra.mxu0 0.0
    %144 = vmatprep.mubr.f32.mxu0 0.0
    %145 = vmatmul.mubr.f32.gmra.mrb[0].mxu0 %v65
    %v146 = vpop.f32.mrb[0].mxu0
    %v147 = vadd.f32 %v46, %v146
    %v148 = vpop.f32.mrb[0].mxu0
    %149 = vmatprep.mubr.f32.mxu0 0.0
    %150 = vmatmul.mubr.f32.gmra.mrb[0].mxu0 %v68
    %v151 = vpop.f32.mrb[0].mxu0
    %v152 = vadd.f32 %v51, %v151
    %v153 = vpop.f32.mrb[0].mxu0
    %154 = vmatprep.mubr.f32.mxu0 0.0
    %155 = vmatmul.mubr.f32.gmra.mrb[0].mxu0 %v71
    %v156 = vpop.f32.mrb[0].mxu0
    %v157 = vadd.f32 %v56, %v156
    %v158 = vpop.f32.mrb[0].mxu0
    %159 = vmatprep.mubr.f32.mxu0 0.0
    %160 = vmatmul.mubr.f32.gmra.mrb[0].mxu0 %v74
    %v161 = vpop.f32.mrb[0].mxu0
    %v162 = vadd.f32 %v61, %v161
    %v163 = vpop.f32.mrb[0].mxu0
    %164 = vdwg.mxu0
    %v165 = vld [vmem:[%s2] sm:$0xff]
    %v166 = vld [vmem:[%s2 + $0x8] sm:$0xff]
    %v167 = vld [vmem:[%s2 + $0x10] sm:$0xff]
    %v168 = vld [vmem:[%s2 + $0x18] sm:$0xff]
    %v169 = vld [vmem:[%s4] sm:$0xff]
    %v170 = vld [vmem:[%s5] sm:$0xff]
    %vm171 = vcmask 64512
    %v173 = vsel %vm171, %v165, 0
    %v176 = vsel %vm171, %v166, 0
    %v179 = vsel %vm171, %v167, 0
    %v182 = vsel %vm171, %v168, 0
    %184 = vmatprep.subr.mxu0 0.0
    %185 = vmatpush1.msra.mxu0 %v169
    %186 = vmatprep.subr.mxu0 0.0
    %187 = vmatpush1.msra.mxu0 0.0
    %188 = vmatprep.subr.mxu0 0.0
    %189 = vmatpush1.msra.mxu0 0.0
    %190 = vmatprep.subr.mxu0 0.0
    %191 = vmatpush1.msra.mxu0 0.0
    %192 = vmatprep.subr.mxu0 0.0
    %193 = vmatpush1.msra.mxu0 0.0
    %194 = vmatprep.subr.mxu0 0.0
    %195 = vmatpush1.msra.mxu0 0.0
    %196 = vmatprep.subr.mxu0 0.0
    %197 = vmatpush1.msra.mxu0 0.0
    %198 = vmatprep.subr.mxu0 0.0
    %199 = vmatpush1.msra.mxu0 0.0
    %200 = vmatprep.subr.mxu0 0.0
    %201 = vmatpush1.msra.mxu0 0.0
    %202 = vmatprep.subr.mxu0 0.0
    %203 = vmatpush1.msra.mxu0 0.0
    %204 = vmatprep.subr.mxu0 0.0
    %205 = vmatpush1.msra.mxu0 0.0
    %206 = vmatprep.subr.mxu0 0.0
    %207 = vmatpush1.msra.mxu0 0.0
    %208 = vmatprep.subr.mxu0 0.0
    %209 = vmatpush1.msra.mxu0 0.0
    %210 = vmatprep.subr.mxu0 0.0
    %211 = vmatpush1.msra.mxu0 0.0
    %212 = vmatprep.subr.mxu0 0.0
    %213 = vmatpush1.msra.mxu0 0.0
    %214 = vmatprep.subr.mxu0 0.0
    %215 = vmatpush1.msra.mxu0 0.0
    %216 = vmatprep.subr.mxu0 0.0
    %217 = vmatpush1.msra.mxu0 0.0
    %218 = vmatprep.subr.mxu0 0.0
    %219 = vmatpush1.msra.mxu0 0.0
    %220 = vmatprep.subr.mxu0 0.0
    %221 = vmatpush1.msra.mxu0 0.0
    %222 = vmatprep.subr.mxu0 0.0
    %223 = vmatpush1.msra.mxu0 0.0
    %224 = vmatprep.subr.mxu0 0.0
    %225 = vmatpush1.msra.mxu0 0.0
    %226 = vmatprep.subr.mxu0 0.0
    %227 = vmatpush1.msra.mxu0 0.0
    %228 = vmatprep.subr.mxu0 0.0
    %229 = vmatpush1.msra.mxu0 0.0
    %230 = vmatprep.subr.mxu0 0.0
    %231 = vmatpush1.msra.mxu0 0.0
    %232 = vmatprep.subr.mxu0 0.0
    %233 = vmatpush1.msra.mxu0 0.0
    %234 = vmatprep.subr.mxu0 0.0
    %235 = vmatpush1.msra.mxu0 0.0
    %236 = vmatprep.subr.mxu0 0.0
    %237 = vmatpush1.msra.mxu0 0.0
    %238 = vmatprep.subr.mxu0 0.0
    %239 = vmatpush1.msra.mxu0 0.0
    %240 = vmatprep.subr.mxu0 0.0
    %241 = vmatpush1.msra.mxu0 0.0
    %242 = vmatprep.subr.mxu0 0.0
    %243 = vmatpush1.msra.mxu0 0.0
    %244 = vmatprep.subr.mxu0 0.0
    %245 = vmatpush1.msra.mxu0 0.0
    %246 = vmatprep.subr.mxu0 0.0
    %247 = vmatpush1.msra.mxu0 0.0
    %248 = vmatprep.mubr.f32.mxu0 0.0
    %249 = vmatmul.mubr.f32.gmra.mrb[0].mxu0 %v173
    %v250 = vpop.f32.mrb[0].mxu0
    %v251 = vadd.f32 %v147, %v250
    %v252 = vpop.f32.mrb[0].mxu0
    %253 = vmatprep.mubr.f32.mxu0 0.0
    %254 = vmatmul.mubr.f32.gmra.mrb[0].mxu0 %v176
    %v255 = vpop.f32.mrb[0].mxu0
    %v256 = vadd.f32 %v152, %v255
    %v257 = vpop.f32.mrb[0].mxu0
    %258 = vmatprep.mubr.f32.mxu0 0.0
    %259 = vmatmul.mubr.f32.gmra.mrb[0].mxu0 %v179
    %v260 = vpop.f32.mrb[0].mxu0
    %v261 = vadd.f32 %v157, %v260
    %v262 = vpop.f32.mrb[0].mxu0
    %263 = vmatprep.mubr.f32.mxu0 0.0
    %264 = vmatmul.mubr.f32.gmra.mrb[0].mxu0 %v182
    %v265 = vpop.f32.mrb[0].mxu0
    %v266 = vadd.f32 %v162, %v265
    %v267 = vpop.f32.mrb[0].mxu0
    %268 = vdwg.mxu0
    %v269 = vxor.u32 %v251, 2147483648
    %v270 = vxor.u32 %v256, 2147483648
    %v271 = vxor.u32 %v261, 2147483648
    %v272 = vmul.f32 %v269, 1.442695
    %v273 = vpow.pop %v272
    %v274 = vmul.f32 %v270, 1.442695
    %v275 = vpow.pop %v274
    %v276 = vmul.f32 %v271, 1.442695
    %v277 = vpow.pop %v276
    %v278 = vadd.f32 %v273, 1.0
    %v279 = vadd.f32 %v275, 1.0
    %v280 = vadd.f32 %v277, 1.0
    %v281 = vrcp.pop %v278
    %v282 = vmul.f32 1.0, %v281
    %v283 = vrcp.pop %v279
    %v284 = vmul.f32 1.0, %v283
    %v285 = vrcp.pop %v280
    %v286 = vmul.f32 1.0, %v285
    %v287 = vtanh.pop %v266
    %v288 = vmul.f32 %v284, %v170
    %v289 = vmul.f32 %v282, %v287
    %v290 = vadd.f32 %v288, %v289
    %v291 = vtanh.pop %v290
    %v292 = vmul.f32 %v286, %v291
    %vm293 = vcmask 7168
    %294 = vst.msk [vmem:[#allocation2] sm:$0xff] %vm293, %v292
    %299 = vrot.lane.b32.xlu0 %v147, 127
    %v300 = vpop.permute.xlu0 %299
    %301 = vrot.lane.b32.xlu0 %v152, 127
    %v302 = vpop.permute.xlu0 %301
    %303 = vrot.lane.b32.xlu0 %v157, 127
    %v304 = vpop.permute.xlu0 %303
    %305 = vrot.lane.b32.xlu0 %v162, 127
    %v306 = vpop.permute.xlu0 %305
    %311 = vmatprep.subr.mxu0 0.0
    %312 = vmatpush1.msra.mxu0 %v292
    %313 = vmatprep.subr.mxu0 0.0
    %314 = vmatpush1.msra.mxu0 0.0
    %315 = vmatprep.subr.mxu0 0.0
    %316 = vmatpush1.msra.mxu0 0.0
    %317 = vmatprep.subr.mxu0 0.0
    %318 = vmatpush1.msra.mxu0 0.0
    %319 = vmatprep.subr.mxu0 0.0
    %320 = vmatpush1.msra.mxu0 0.0
    %321 = vmatprep.subr.mxu0 0.0
    %322 = vmatpush1.msra.mxu0 0.0
    %323 = vmatprep.subr.mxu0 0.0
    %324 = vmatpush1.msra.mxu0 0.0
    %325 = vmatprep.subr.mxu0 0.0
    %326 = vmatpush1.msra.mxu0 0.0
    %327 = vmatprep.subr.mxu0 0.0
    %328 = vmatpush1.msra.mxu0 0.0
    %329 = vmatprep.subr.mxu0 0.0
    %330 = vmatpush1.msra.mxu0 0.0
    %331 = vmatprep.subr.mxu0 0.0
    %332 = vmatpush1.msra.mxu0 0.0
    %333 = vmatprep.subr.mxu0 0.0
    %334 = vmatpush1.msra.mxu0 0.0
    %335 = vmatprep.subr.mxu0 0.0
    %336 = vmatpush1.msra.mxu0 0.0
    %337 = vmatprep.subr.mxu0 0.0
    %338 = vmatpush1.msra.mxu0 0.0
    %339 = vmatprep.subr.mxu0 0.0
    %340 = vmatpush1.msra.mxu0 0.0
    %341 = vmatprep.subr.mxu0 0.0
    %342 = vmatpush1.msra.mxu0 0.0
    %343 = vmatprep.subr.mxu0 0.0
    %344 = vmatpush1.msra.mxu0 0.0
    %345 = vmatprep.subr.mxu0 0.0
    %346 = vmatpush1.msra.mxu0 0.0
    %347 = vmatprep.subr.mxu0 0.0
    %348 = vmatpush1.msra.mxu0 0.0
    %349 = vmatprep.subr.mxu0 0.0
    %350 = vmatpush1.msra.mxu0 0.0
    %351 = vmatprep.subr.mxu0 0.0
    %352 = vmatpush1.msra.mxu0 0.0
    %353 = vmatprep.subr.mxu0 0.0
    %354 = vmatpush1.msra.mxu0 0.0
    %355 = vmatprep.subr.mxu0 0.0
    %356 = vmatpush1.msra.mxu0 0.0
    %357 = vmatprep.subr.mxu0 0.0
    %358 = vmatpush1.msra.mxu0 0.0
    %359 = vmatprep.subr.mxu0 0.0
    %360 = vmatpush1.msra.mxu0 0.0
    %361 = vmatprep.subr.mxu0 0.0
    %362 = vmatpush1.msra.mxu0 0.0
    %363 = vmatprep.subr.mxu0 0.0
    %364 = vmatpush1.msra.mxu0 0.0
    %365 = vmatprep.subr.mxu0 0.0
    %366 = vmatpush1.msra.mxu0 0.0
    %367 = vmatprep.subr.mxu0 0.0
    %368 = vmatpush1.msra.mxu0 0.0
    %369 = vmatprep.subr.mxu0 0.0
    %370 = vmatpush1.msra.mxu0 0.0
    %371 = vmatprep.subr.mxu0 0.0
    %372 = vmatpush1.msra.mxu0 0.0
    %373 = vmatprep.subr.mxu0 0.0
    %374 = vmatpush1.msra.mxu0 0.0
    %375 = vmatprep.mubr.f32.mxu0 0.0
    %376 = vmatmul.mubr.f32.gmra.mrb[0].mxu0 %v173
    %v377 = vpop.f32.mrb[0].mxu0
    %v378 = vadd.f32 %v300, %v377
    %v379 = vpop.f32.mrb[0].mxu0
    %380 = vmatprep.mubr.f32.mxu0 0.0
    %381 = vmatmul.mubr.f32.gmra.mrb[0].mxu0 %v176
    %v382 = vpop.f32.mrb[0].mxu0
    %v383 = vadd.f32 %v302, %v382
    %v384 = vpop.f32.mrb[0].mxu0
    %385 = vmatprep.mubr.f32.mxu0 0.0
    %386 = vmatmul.mubr.f32.gmra.mrb[0].mxu0 %v179
    %v387 = vpop.f32.mrb[0].mxu0
    %v388 = vadd.f32 %v304, %v387
    %v389 = vpop.f32.mrb[0].mxu0
    %390 = vmatprep.mubr.f32.mxu0 0.0
    %391 = vmatmul.mubr.f32.gmra.mrb[0].mxu0 %v182
    %v392 = vpop.f32.mrb[0].mxu0
    %v393 = vadd.f32 %v306, %v392
    %v394 = vpop.f32.mrb[0].mxu0
    %395 = vdwg.mxu0
    %v396 = vxor.u32 %v378, 2147483648
    %v397 = vxor.u32 %v383, 2147483648
    %v398 = vxor.u32 %v388, 2147483648
    %v399 = vmul.f32 %v396, 1.442695
    %v400 = vpow.pop %v399
    %v401 = vmul.f32 %v397, 1.442695
    %v402 = vpow.pop %v401
    %v403 = vmul.f32 %v398, 1.442695
    %v404 = vpow.pop %v403
    %v405 = vadd.f32 %v400, 1.0
    %v406 = vadd.f32 %v402, 1.0
    %v407 = vadd.f32 %v404, 1.0
    %v408 = vrcp.pop %v405
    %v409 = vmul.f32 1.0, %v408
    %v410 = vrcp.pop %v406
    %v411 = vmul.f32 1.0, %v410
    %v412 = vrcp.pop %v407
    %v413 = vmul.f32 1.0, %v412
    %v414 = vtanh.pop %v393
    %v415 = vmul.f32 %v411, %v290
    %v416 = vmul.f32 %v409, %v414
    %v417 = vadd.f32 %v415, %v416
    %v418 = vtanh.pop %v417
    %v419 = vmul.f32 %v413, %v418
    %421 = vrot.lane.b32.xlu0 %v419, 1
    %v422 = vpop.permute.xlu0 %421
    %vm424 = vcmask 15368
    %425 = vst.msk [vmem:[#allocation2] sm:$0xff] %vm424, %v422
    %426 = vrot.lane.b32.xlu0 %v147, 126
    %v427 = vpop.permute.xlu0 %426
    %428 = vrot.lane.b32.xlu0 %v152, 126
    %v429 = vpop.permute.xlu0 %428
    %430 = vrot.lane.b32.xlu0 %v157, 126
    %v431 = vpop.permute.xlu0 %430
    %432 = vrot.lane.b32.xlu0 %v162, 126
    %v433 = vpop.permute.xlu0 %432
    %438 = vmatprep.subr.mxu0 0.0
    %439 = vmatpush1.msra.mxu0 %v419
    %440 = vmatprep.subr.mxu0 0.0
    %441 = vmatpush1.msra.mxu0 0.0
    %442 = vmatprep.subr.mxu0 0.0
    %443 = vmatpush1.msra.mxu0 0.0
    %444 = vmatprep.subr.mxu0 0.0
    %445 = vmatpush1.msra.mxu0 0.0
    %446 = vmatprep.subr.mxu0 0.0
    %447 = vmatpush1.msra.mxu0 0.0
    %448 = vmatprep.subr.mxu0 0.0
    %449 = vmatpush1.msra.mxu0 0.0
    %450 = vmatprep.subr.mxu0 0.0
    %451 = vmatpush1.msra.mxu0 0.0
    %452 = vmatprep.subr.mxu0 0.0
    %453 = vmatpush1.msra.mxu0 0.0
    %454 = vmatprep.subr.mxu0 0.0
    %455 = vmatpush1.msra.mxu0 0.0
    %456 = vmatprep.subr.mxu0 0.0
    %457 = vmatpush1.msra.mxu0 0.0
    %458 = vmatprep.subr.mxu0 0.0
    %459 = vmatpush1.msra.mxu0 0.0
    %460 = vmatprep.subr.mxu0 0.0
    %461 = vmatpush1.msra.mxu0 0.0
    %462 = vmatprep.subr.mxu0 0.0
    %463 = vmatpush1.msra.mxu0 0.0
    %464 = vmatprep.subr.mxu0 0.0
    %465 = vmatpush1.msra.mxu0 0.0
    %466 = vmatprep.subr.mxu0 0.0
    %467 = vmatpush1.msra.mxu0 0.0
    %468 = vmatprep.subr.mxu0 0.0
    %469 = vmatpush1.msra.mxu0 0.0
    %470 = vmatprep.subr.mxu0 0.0
    %471 = vmatpush1.msra.mxu0 0.0
    %472 = vmatprep.subr.mxu0 0.0
    %473 = vmatpush1.msra.mxu0 0.0
    %474 = vmatprep.subr.mxu0 0.0
    %475 = vmatpush1.msra.mxu0 0.0
    %476 = vmatprep.subr.mxu0 0.0
    %477 = vmatpush1.msra.mxu0 0.0
    %478 = vmatprep.subr.mxu0 0.0
    %479 = vmatpush1.msra.mxu0 0.0
    %480 = vmatprep.subr.mxu0 0.0
    %481 = vmatpush1.msra.mxu0 0.0
    %482 = vmatprep.subr.mxu0 0.0
    %483 = vmatpush1.msra.mxu0 0.0
    %484 = vmatprep.subr.mxu0 0.0
    %485 = vmatpush1.msra.mxu0 0.0
    %486 = vmatprep.subr.mxu0 0.0
    %487 = vmatpush1.msra.mxu0 0.0
    %488 = vmatprep.subr.mxu0 0.0
    %489 = vmatpush1.msra.mxu0 0.0
    %490 = vmatprep.subr.mxu0 0.0
    %491 = vmatpush1.msra.mxu0 0.0
    %492 = vmatprep.subr.mxu0 0.0
    %493 = vmatpush1.msra.mxu0 0.0
    %494 = vmatprep.subr.mxu0 0.0
    %495 = vmatpush1.msra.mxu0 0.0
    %496 = vmatprep.subr.mxu0 0.0
    %497 = vmatpush1.msra.mxu0 0.0
    %498 = vmatprep.subr.mxu0 0.0
    %499 = vmatpush1.msra.mxu0 0.0
    %500 = vmatprep.subr.mxu0 0.0
    %501 = vmatpush1.msra.mxu0 0.0
    %502 = vmatprep.mubr.f32.mxu0 0.0
    %503 = vmatmul.mubr.f32.gmra.mrb[0].mxu0 %v173
    %v504 = vpop.f32.mrb[0].mxu0
    %v505 = vadd.f32 %v427, %v504
    %v506 = vpop.f32.mrb[0].mxu0
    %507 = vmatprep.mubr.f32.mxu0 0.0
    %508 = vmatmul.mubr.f32.gmra.mrb[0].mxu0 %v176
    %v509 = vpop.f32.mrb[0].mxu0
    %v510 = vadd.f32 %v429, %v509
    %v511 = vpop.f32.mrb[0].mxu0
    %512 = vmatprep.mubr.f32.mxu0 0.0
    %513 = vmatmul.mubr.f32.gmra.mrb[0].mxu0 %v179
    %v514 = vpop.f32.mrb[0].mxu0
    %v515 = vadd.f32 %v431, %v514
    %v516 = vpop.f32.mrb[0].mxu0
    %517 = vmatprep.mubr.f32.mxu0 0.0
    %518 = vmatmul.mubr.f32.gmra.mrb[0].mxu0 %v182
    %v519 = vpop.f32.mrb[0].mxu0
    %v520 = vadd.f32 %v433, %v519
    %v521 = vpop.f32.mrb[0].mxu0
    %522 = vdwg.mxu0
    %v523 = vxor.u32 %v505, 2147483648
    %v524 = vxor.u32 %v510, 2147483648
    %v525 = vxor.u32 %v515, 2147483648
    %v526 = vmul.f32 %v523, 1.442695
    %v527 = vpow.pop %v526
    %v528 = vmul.f32 %v524, 1.442695
    %v529 = vpow.pop %v528
    %v530 = vmul.f32 %v525, 1.442695
    %v531 = vpow.pop %v530
    %v532 = vadd.f32 %v527, 1.0
    %v533 = vadd.f32 %v529, 1.0
    %v534 = vadd.f32 %v531, 1.0
    %v535 = vrcp.pop %v532
    %v536 = vmul.f32 1.0, %v535
    %v537 = vrcp.pop %v533
    %v538 = vmul.f32 1.0, %v537
    %v539 = vrcp.pop %v534
    %v540 = vmul.f32 1.0, %v539
    %v541 = vtanh.pop %v520
    %v542 = vmul.f32 %v538, %v417
    %v543 = vmul.f32 %v536, %v541
    %v544 = vadd.f32 %v542, %v543
    %v545 = vtanh.pop %v544
    %v546 = vmul.f32 %v540, %v545
    %548 = vrot.lane.b32.xlu0 %v546, 2
    %v549 = vpop.permute.xlu0 %548
    %vm551 = vcmask 23568
    %552 = vst.msk [vmem:[#allocation2] sm:$0xff] %vm551, %v549
    %553 = vrot.lane.b32.xlu0 %v147, 125
    %v554 = vpop.permute.xlu0 %553
    %555 = vrot.lane.b32.xlu0 %v152, 125
    %v556 = vpop.permute.xlu0 %555
    %557 = vrot.lane.b32.xlu0 %v157, 125
    %v558 = vpop.permute.xlu0 %557
    %559 = vrot.lane.b32.xlu0 %v162, 125
    %v560 = vpop.permute.xlu0 %559
    %565 = vmatprep.subr.mxu0 0.0
    %566 = vmatpush1.msra.mxu0 %v546
    %567 = vmatprep.subr.mxu0 0.0
    %568 = vmatpush1.msra.mxu0 0.0
    %569 = vmatprep.subr.mxu0 0.0
    %570 = vmatpush1.msra.mxu0 0.0
    %571 = vmatprep.subr.mxu0 0.0
    %572 = vmatpush1.msra.mxu0 0.0
    %573 = vmatprep.subr.mxu0 0.0
    %574 = vmatpush1.msra.mxu0 0.0
    %575 = vmatprep.subr.mxu0 0.0
    %576 = vmatpush1.msra.mxu0 0.0
    %577 = vmatprep.subr.mxu0 0.0
    %578 = vmatpush1.msra.mxu0 0.0
    %579 = vmatprep.subr.mxu0 0.0
    %580 = vmatpush1.msra.mxu0 0.0
    %581 = vmatprep.subr.mxu0 0.0
    %582 = vmatpush1.msra.mxu0 0.0
    %583 = vmatprep.subr.mxu0 0.0
    %584 = vmatpush1.msra.mxu0 0.0
    %585 = vmatprep.subr.mxu0 0.0
    %586 = vmatpush1.msra.mxu0 0.0
    %587 = vmatprep.subr.mxu0 0.0
    %588 = vmatpush1.msra.mxu0 0.0
    %589 = vmatprep.subr.mxu0 0.0
    %590 = vmatpush1.msra.mxu0 0.0
    %591 = vmatprep.subr.mxu0 0.0
    %592 = vmatpush1.msra.mxu0 0.0
    %593 = vmatprep.subr.mxu0 0.0
    %594 = vmatpush1.msra.mxu0 0.0
    %595 = vmatprep.subr.mxu0 0.0
    %596 = vmatpush1.msra.mxu0 0.0
    %597 = vmatprep.subr.mxu0 0.0
    %598 = vmatpush1.msra.mxu0 0.0
    %599 = vmatprep.subr.mxu0 0.0
    %600 = vmatpush1.msra.mxu0 0.0
    %601 = vmatprep.subr.mxu0 0.0
    %602 = vmatpush1.msra.mxu0 0.0
    %603 = vmatprep.subr.mxu0 0.0
    %604 = vmatpush1.msra.mxu0 0.0
    %605 = vmatprep.subr.mxu0 0.0
    %606 = vmatpush1.msra.mxu0 0.0
    %607 = vmatprep.subr.mxu0 0.0
    %608 = vmatpush1.msra.mxu0 0.0
    %609 = vmatprep.subr.mxu0 0.0
    %610 = vmatpush1.msra.mxu0 0.0
    %611 = vmatprep.subr.mxu0 0.0
    %612 = vmatpush1.msra.mxu0 0.0
    %613 = vmatprep.subr.mxu0 0.0
    %614 = vmatpush1.msra.mxu0 0.0
    %615 = vmatprep.subr.mxu0 0.0
    %616 = vmatpush1.msra.mxu0 0.0
    %617 = vmatprep.subr.mxu0 0.0
    %618 = vmatpush1.msra.mxu0 0.0
    %619 = vmatprep.subr.mxu0 0.0
    %620 = vmatpush1.msra.mxu0 0.0
    %621 = vmatprep.subr.mxu0 0.0
    %622 = vmatpush1.msra.mxu0 0.0
    %623 = vmatprep.subr.mxu0 0.0
    %624 = vmatpush1.msra.mxu0 0.0
    %625 = vmatprep.subr.mxu0 0.0
    %626 = vmatpush1.msra.mxu0 0.0
    %627 = vmatprep.subr.mxu0 0.0
    %628 = vmatpush1.msra.mxu0 0.0
    %629 = vmatprep.mubr.f32.mxu0 0.0
    %630 = vmatmul.mubr.f32.gmra.mrb[0].mxu0 %v173
    %v631 = vpop.f32.mrb[0].mxu0
    %v632 = vadd.f32 %v554, %v631
    %v633 = vpop.f32.mrb[0].mxu0
    %634 = vmatprep.mubr.f32.mxu0 0.0
    %635 = vmatmul.mubr.f32.gmra.mrb[0].mxu0 %v176
    %v636 = vpop.f32.mrb[0].mxu0
    %v637 = vadd.f32 %v556, %v636
    %v638 = vpop.f32.mrb[0].mxu0
    %639 = vmatprep.mubr.f32.mxu0 0.0
    %640 = vmatmul.mubr.f32.gmra.mrb[0].mxu0 %v179
    %v641 = vpop.f32.mrb[0].mxu0
    %v642 = vadd.f32 %v558, %v641
    %v643 = vpop.f32.mrb[0].mxu0
    %644 = vmatprep.mubr.f32.mxu0 0.0
    %645 = vmatmul.mubr.f32.gmra.mrb[0].mxu0 %v182
    %v646 = vpop.f32.mrb[0].mxu0
    %v647 = vadd.f32 %v560, %v646
    %v648 = vpop.f32.mrb[0].mxu0
    %649 = vdwg.mxu0
    %v650 = vxor.u32 %v632, 2147483648
    %v651 = vxor.u32 %v637, 2147483648
    %v652 = vxor.u32 %v642, 2147483648
    %v653 = vmul.f32 %v650, 1.442695
    %v654 = vpow.pop %v653
    %v655 = vmul.f32 %v651, 1.442695
    %v656 = vpow.pop %v655
    %v657 = vmul.f32 %v652, 1.442695
    %v658 = vpow.pop %v657
    %v659 = vadd.f32 %v654, 1.0
    %v660 = vadd.f32 %v656, 1.0
    %v661 = vadd.f32 %v658, 1.0
    %v662 = vrcp.pop %v659
    %v663 = vmul.f32 1.0, %v662
    %v664 = vrcp.pop %v660
    %v665 = vmul.f32 1.0, %v664
    %v666 = vrcp.pop %v661
    %v667 = vmul.f32 1.0, %v666
    %v668 = vtanh.pop %v647
    %v669 = vmul.f32 %v665, %v544
    %v670 = vmul.f32 %v663, %v668
    %v671 = vadd.f32 %v669, %v670
    %v672 = vtanh.pop %v671
    %v673 = vmul.f32 %v667, %v672
    %675 = vrot.lane.b32.xlu0 %v673, 3
    %v676 = vpop.permute.xlu0 %675
    %vm678 = vcmask 31768
    %679 = vst.msk [vmem:[#allocation2] sm:$0xff] %vm678, %v676
    %680 = vrot.lane.b32.xlu0 %v147, 124
    %v681 = vpop.permute.xlu0 %680
    %682 = vrot.lane.b32.xlu0 %v152, 124
    %v683 = vpop.permute.xlu0 %682
    %684 = vrot.lane.b32.xlu0 %v157, 124
    %v685 = vpop.permute.xlu0 %684
    %686 = vrot.lane.b32.xlu0 %v162, 124
    %v687 = vpop.permute.xlu0 %686
    %692 = vmatprep.subr.mxu0 0.0
    %693 = vmatpush1.msra.mxu0 %v673
    %694 = vmatprep.subr.mxu0 0.0
    %695 = vmatpush1.msra.mxu0 0.0
    %696 = vmatprep.subr.mxu0 0.0
    %697 = vmatpush1.msra.mxu0 0.0
    %698 = vmatprep.subr.mxu0 0.0
    %699 = vmatpush1.msra.mxu0 0.0
    %700 = vmatprep.subr.mxu0 0.0
    %701 = vmatpush1.msra.mxu0 0.0
    %702 = vmatprep.subr.mxu0 0.0
    %703 = vmatpush1.msra.mxu0 0.0
    %704 = vmatprep.subr.mxu0 0.0
    %705 = vmatpush1.msra.mxu0 0.0
    %706 = vmatprep.subr.mxu0 0.0
    %707 = vmatpush1.msra.mxu0 0.0
    %708 = vmatprep.subr.mxu0 0.0
    %709 = vmatpush1.msra.mxu0 0.0
    %710 = vmatprep.subr.mxu0 0.0
    %711 = vmatpush1.msra.mxu0 0.0
    %712 = vmatprep.subr.mxu0 0.0
    %713 = vmatpush1.msra.mxu0 0.0
    %714 = vmatprep.subr.mxu0 0.0
    %715 = vmatpush1.msra.mxu0 0.0
    %716 = vmatprep.subr.mxu0 0.0
    %717 = vmatpush1.msra.mxu0 0.0
    %718 = vmatprep.subr.mxu0 0.0
    %719 = vmatpush1.msra.mxu0 0.0
    %720 = vmatprep.subr.mxu0 0.0
    %721 = vmatpush1.msra.mxu0 0.0
    %722 = vmatprep.subr.mxu0 0.0
    %723 = vmatpush1.msra.mxu0 0.0
    %724 = vmatprep.subr.mxu0 0.0
    %725 = vmatpush1.msra.mxu0 0.0
    %726 = vmatprep.subr.mxu0 0.0
    %727 = vmatpush1.msra.mxu0 0.0
    %728 = vmatprep.subr.mxu0 0.0
    %729 = vmatpush1.msra.mxu0 0.0
    %730 = vmatprep.subr.mxu0 0.0
    %731 = vmatpush1.msra.mxu0 0.0
    %732 = vmatprep.subr.mxu0 0.0
    %733 = vmatpush1.msra.mxu0 0.0
    %734 = vmatprep.subr.mxu0 0.0
    %735 = vmatpush1.msra.mxu0 0.0
    %736 = vmatprep.subr.mxu0 0.0
    %737 = vmatpush1.msra.mxu0 0.0
    %738 = vmatprep.subr.mxu0 0.0
    %739 = vmatpush1.msra.mxu0 0.0
    %740 = vmatprep.subr.mxu0 0.0
    %741 = vmatpush1.msra.mxu0 0.0
    %742 = vmatprep.subr.mxu0 0.0
    %743 = vmatpush1.msra.mxu0 0.0
    %744 = vmatprep.subr.mxu0 0.0
    %745 = vmatpush1.msra.mxu0 0.0
    %746 = vmatprep.subr.mxu0 0.0
    %747 = vmatpush1.msra.mxu0 0.0
    %748 = vmatprep.subr.mxu0 0.0
    %749 = vmatpush1.msra.mxu0 0.0
    %750 = vmatprep.subr.mxu0 0.0
    %751 = vmatpush1.msra.mxu0 0.0
    %752 = vmatprep.subr.mxu0 0.0
    %753 = vmatpush1.msra.mxu0 0.0
    %754 = vmatprep.subr.mxu0 0.0
    %755 = vmatpush1.msra.mxu0 0.0
    %756 = vmatprep.mubr.f32.mxu0 0.0
    %757 = vmatmul.mubr.f32.gmra.mrb[0].mxu0 %v173
    %v758 = vpop.f32.mrb[0].mxu0
    %v759 = vadd.f32 %v681, %v758
    %v760 = vpop.f32.mrb[0].mxu0
    %761 = vmatprep.mubr.f32.mxu0 0.0
    %762 = vmatmul.mubr.f32.gmra.mrb[0].mxu0 %v176
    %v763 = vpop.f32.mrb[0].mxu0
    %v764 = vadd.f32 %v683, %v763
    %v765 = vpop.f32.mrb[0].mxu0
    %766 = vmatprep.mubr.f32.mxu0 0.0
    %767 = vmatmul.mubr.f32.gmra.mrb[0].mxu0 %v179
    %v768 = vpop.f32.mrb[0].mxu0
    %v769 = vadd.f32 %v685, %v768
    %v770 = vpop.f32.mrb[0].mxu0
    %771 = vmatprep.mubr.f32.mxu0 0.0
    %772 = vmatmul.mubr.f32.gmra.mrb[0].mxu0 %v182
    %v773 = vpop.f32.mrb[0].mxu0
    %v774 = vadd.f32 %v687, %v773
    %v775 = vpop.f32.mrb[0].mxu0
    %776 = vdwg.mxu0
    %v777 = vxor.u32 %v759, 2147483648
    %v778 = vxor.u32 %v764, 2147483648
    %v779 = vxor.u32 %v769, 2147483648
    %v780 = vmul.f32 %v777, 1.442695
    %v781 = vpow.pop %v780
    %v782 = vmul.f32 %v778, 1.442695
    %v783 = vpow.pop %v782
    %v784 = vmul.f32 %v779, 1.442695
    %v785 = vpow.pop %v784
    %v786 = vadd.f32 %v781, 1.0
    %v787 = vadd.f32 %v783, 1.0
    %v788 = vadd.f32 %v785, 1.0
    %v789 = vrcp.pop %v786
    %v790 = vmul.f32 1.0, %v789
    %v791 = vrcp.pop %v787
    %v792 = vmul.f32 1.0, %v791
    %v793 = vrcp.pop %v788
    %v794 = vmul.f32 1.0, %v793
    %v795 = vtanh.pop %v774
    %v796 = vmul.f32 %v792, %v671
    %v797 = vmul.f32 %v790, %v795
    %v798 = vadd.f32 %v796, %v797
    %v799 = vtanh.pop %v798
    %v800 = vmul.f32 %v794, %v799
    %802 = vrot.lane.b32.xlu0 %v800, 4
    %v803 = vpop.permute.xlu0 %802
    %vm805 = vcmask 39968
    %806 = vst.msk [vmem:[#allocation2] sm:$0xff] %vm805, %v803
    %807 = vrot.lane.b32.xlu0 %v147, 123
    %v808 = vpop.permute.xlu0 %807
    %809 = vrot.lane.b32.xlu0 %v152, 123
    %v810 = vpop.permute.xlu0 %809
    %811 = vrot.lane.b32.xlu0 %v157, 123
    %v812 = vpop.permute.xlu0 %811
    %813 = vrot.lane.b32.xlu0 %v162, 123
    %v814 = vpop.permute.xlu0 %813
    %819 = vmatprep.subr.mxu0 0.0
    %820 = vmatpush1.msra.mxu0 %v800
    %821 = vmatprep.subr.mxu0 0.0
    %822 = vmatpush1.msra.mxu0 0.0
    %823 = vmatprep.subr.mxu0 0.0
    %824 = vmatpush1.msra.mxu0 0.0
    %825 = vmatprep.subr.mxu0 0.0
    %826 = vmatpush1.msra.mxu0 0.0
    %827 = vmatprep.subr.mxu0 0.0
    %828 = vmatpush1.msra.mxu0 0.0
    %829 = vmatprep.subr.mxu0 0.0
    %830 = vmatpush1.msra.mxu0 0.0
    %831 = vmatprep.subr.mxu0 0.0
    %832 = vmatpush1.msra.mxu0 0.0
    %833 = vmatprep.subr.mxu0 0.0
    %834 = vmatpush1.msra.mxu0 0.0
    %835 = vmatprep.subr.mxu0 0.0
    %836 = vmatpush1.msra.mxu0 0.0
    %837 = vmatprep.subr.mxu0 0.0
    %838 = vmatpush1.msra.mxu0 0.0
    %839 = vmatprep.subr.mxu0 0.0
    %840 = vmatpush1.msra.mxu0 0.0
    %841 = vmatprep.subr.mxu0 0.0
    %842 = vmatpush1.msra.mxu0 0.0
    %843 = vmatprep.subr.mxu0 0.0
    %844 = vmatpush1.msra.mxu0 0.0
    %845 = vmatprep.subr.mxu0 0.0
    %846 = vmatpush1.msra.mxu0 0.0
    %847 = vmatprep.subr.mxu0 0.0
    %848 = vmatpush1.msra.mxu0 0.0
    %849 = vmatprep.subr.mxu0 0.0
    %850 = vmatpush1.msra.mxu0 0.0
    %851 = vmatprep.subr.mxu0 0.0
    %852 = vmatpush1.msra.mxu0 0.0
    %853 = vmatprep.subr.mxu0 0.0
    %854 = vmatpush1.msra.mxu0 0.0
    %855 = vmatprep.subr.mxu0 0.0
    %856 = vmatpush1.msra.mxu0 0.0
    %857 = vmatprep.subr.mxu0 0.0
    %858 = vmatpush1.msra.mxu0 0.0
    %859 = vmatprep.subr.mxu0 0.0
    %860 = vmatpush1.msra.mxu0 0.0
    %861 = vmatprep.subr.mxu0 0.0
    %862 = vmatpush1.msra.mxu0 0.0
    %863 = vmatprep.subr.mxu0 0.0
    %864 = vmatpush1.msra.mxu0 0.0
    %865 = vmatprep.subr.mxu0 0.0
    %866 = vmatpush1.msra.mxu0 0.0
    %867 = vmatprep.subr.mxu0 0.0
    %868 = vmatpush1.msra.mxu0 0.0
    %869 = vmatprep.subr.mxu0 0.0
    %870 = vmatpush1.msra.mxu0 0.0
    %871 = vmatprep.subr.mxu0 0.0
    %872 = vmatpush1.msra.mxu0 0.0
    %873 = vmatprep.subr.mxu0 0.0
    %874 = vmatpush1.msra.mxu0 0.0
    %875 = vmatprep.subr.mxu0 0.0
    %876 = vmatpush1.msra.mxu0 0.0
    %877 = vmatprep.subr.mxu0 0.0
    %878 = vmatpush1.msra.mxu0 0.0
    %879 = vmatprep.subr.mxu0 0.0
    %880 = vmatpush1.msra.mxu0 0.0
    %881 = vmatprep.subr.mxu0 0.0
    %882 = vmatpush1.msra.mxu0 0.0
    %883 = vmatprep.mubr.f32.mxu0 0.0
    %884 = vmatmul.mubr.f32.gmra.mrb[0].mxu0 %v173
    %v885 = vpop.f32.mrb[0].mxu0
    %v886 = vadd.f32 %v808, %v885
    %v887 = vpop.f32.mrb[0].mxu0
    %888 = vmatprep.mubr.f32.mxu0 0.0
    %889 = vmatmul.mubr.f32.gmra.mrb[0].mxu0 %v176
    %v890 = vpop.f32.mrb[0].mxu0
    %v891 = vadd.f32 %v810, %v890
    %v892 = vpop.f32.mrb[0].mxu0
    %893 = vmatprep.mubr.f32.mxu0 0.0
    %894 = vmatmul.mubr.f32.gmra.mrb[0].mxu0 %v179
    %v895 = vpop.f32.mrb[0].mxu0
    %v896 = vadd.f32 %v812, %v895
    %v897 = vpop.f32.mrb[0].mxu0
    %898 = vmatprep.mubr.f32.mxu0 0.0
    %899 = vmatmul.mubr.f32.gmra.mrb[0].mxu0 %v182
    %v900 = vpop.f32.mrb[0].mxu0
    %v901 = vadd.f32 %v814, %v900
    %v902 = vpop.f32.mrb[0].mxu0
    %903 = vdwg.mxu0
    %v904 = vxor.u32 %v886, 2147483648
    %v905 = vxor.u32 %v891, 2147483648
    %v906 = vxor.u32 %v896, 2147483648
    %v907 = vmul.f32 %v904, 1.442695
    %v908 = vpow.pop %v907
    %v909 = vmul.f32 %v905, 1.442695
    %v910 = vpow.pop %v909
    %v911 = vmul.f32 %v906, 1.442695
    %v912 = vpow.pop %v911
    %v913 = vadd.f32 %v908, 1.0
    %v914 = vadd.f32 %v910, 1.0
    %v915 = vadd.f32 %v912, 1.0
    %v916 = vrcp.pop %v913
    %v917 = vmul.f32 1.0, %v916
    %v918 = vrcp.pop %v914
    %v919 = vmul.f32 1.0, %v918
    %v920 = vrcp.pop %v915
    %v921 = vmul.f32 1.0, %v920
    %v922 = vtanh.pop %v901
    %v923 = vmul.f32 %v919, %v798
    %v924 = vmul.f32 %v917, %v922
    %v925 = vadd.f32 %v923, %v924
    %v926 = vtanh.pop %v925
    %v927 = vmul.f32 %v921, %v926
    %929 = vrot.lane.b32.xlu0 %v927, 5
    %v930 = vpop.permute.xlu0 %929
    %vm932 = vcmask 48168
    %933 = vst.msk [vmem:[#allocation2] sm:$0xff] %vm932, %v930
    %934 = vrot.lane.b32.xlu0 %v147, 122
    %v935 = vpop.permute.xlu0 %934
    %936 = vrot.lane.b32.xlu0 %v152, 122
    %v937 = vpop.permute.xlu0 %936
    %938 = vrot.lane.b32.xlu0 %v157, 122
    %v939 = vpop.permute.xlu0 %938
    %940 = vrot.lane.b32.xlu0 %v162, 122
    %v941 = vpop.permute.xlu0 %940
    %946 = vmatprep.subr.mxu0 0.0
    %947 = vmatpush1.msra.mxu0 %v927
    %948 = vmatprep.subr.mxu0 0.0
    %949 = vmatpush1.msra.mxu0 0.0
    %950 = vmatprep.subr.mxu0 0.0
    %951 = vmatpush1.msra.mxu0 0.0
    %952 = vmatprep.subr.mxu0 0.0
    %953 = vmatpush1.msra.mxu0 0.0
    %954 = vmatprep.subr.mxu0 0.0
    %955 = vmatpush1.msra.mxu0 0.0
    %956 = vmatprep.subr.mxu0 0.0
    %957 = vmatpush1.msra.mxu0 0.0
    %958 = vmatprep.subr.mxu0 0.0
    %959 = vmatpush1.msra.mxu0 0.0
    %960 = vmatprep.subr.mxu0 0.0
    %961 = vmatpush1.msra.mxu0 0.0
    %962 = vmatprep.subr.mxu0 0.0
    %963 = vmatpush1.msra.mxu0 0.0
    %964 = vmatprep.subr.mxu0 0.0
    %965 = vmatpush1.msra.mxu0 0.0
    %966 = vmatprep.subr.mxu0 0.0
    %967 = vmatpush1.msra.mxu0 0.0
    %968 = vmatprep.subr.mxu0 0.0
    %969 = vmatpush1.msra.mxu0 0.0
    %970 = vmatprep.subr.mxu0 0.0
    %971 = vmatpush1.msra.mxu0 0.0
    %972 = vmatprep.subr.mxu0 0.0
    %973 = vmatpush1.msra.mxu0 0.0
    %974 = vmatprep.subr.mxu0 0.0
    %975 = vmatpush1.msra.mxu0 0.0
    %976 = vmatprep.subr.mxu0 0.0
    %977 = vmatpush1.msra.mxu0 0.0
    %978 = vmatprep.subr.mxu0 0.0
    %979 = vmatpush1.msra.mxu0 0.0
    %980 = vmatprep.subr.mxu0 0.0
    %981 = vmatpush1.msra.mxu0 0.0
    %982 = vmatprep.subr.mxu0 0.0
    %983 = vmatpush1.msra.mxu0 0.0
    %984 = vmatprep.subr.mxu0 0.0
    %985 = vmatpush1.msra.mxu0 0.0
    %986 = vmatprep.subr.mxu0 0.0
    %987 = vmatpush1.msra.mxu0 0.0
    %988 = vmatprep.subr.mxu0 0.0
    %989 = vmatpush1.msra.mxu0 0.0
    %990 = vmatprep.subr.mxu0 0.0
    %991 = vmatpush1.msra.mxu0 0.0
    %992 = vmatprep.subr.mxu0 0.0
    %993 = vmatpush1.msra.mxu0 0.0
    %994 = vmatprep.subr.mxu0 0.0
    %995 = vmatpush1.msra.mxu0 0.0
    %996 = vmatprep.subr.mxu0 0.0
    %997 = vmatpush1.msra.mxu0 0.0
    %998 = vmatprep.subr.mxu0 0.0
    %999 = vmatpush1.msra.mxu0 0.0
    %1000 = vmatprep.subr.mxu0 0.0
    %1001 = vmatpush1.msra.mxu0 0.0
    %1002 = vmatprep.subr.mxu0 0.0
    %1003 = vmatpush1.msra.mxu0 0.0
    %1004 = vmatprep.subr.mxu0 0.0
    %1005 = vmatpush1.msra.mxu0 0.0
    %1006 = vmatprep.subr.mxu0 0.0
    %1007 = vmatpush1.msra.mxu0 0.0
    %1008 = vmatprep.subr.mxu0 0.0
    %1009 = vmatpush1.msra.mxu0 0.0
    %1010 = vmatprep.mubr.f32.mxu0 0.0
    %1011 = vmatmul.mubr.f32.gmra.mrb[0].mxu0 %v173
    %v1012 = vpop.f32.mrb[0].mxu0
    %v1013 = vadd.f32 %v935, %v1012
    %v1014 = vpop.f32.mrb[0].mxu0
    %1015 = vmatprep.mubr.f32.mxu0 0.0
    %1016 = vmatmul.mubr.f32.gmra.mrb[0].mxu0 %v176
    %v1017 = vpop.f32.mrb[0].mxu0
    %v1018 = vadd.f32 %v937, %v1017
    %v1019 = vpop.f32.mrb[0].mxu0
    %1020 = vmatprep.mubr.f32.mxu0 0.0
    %1021 = vmatmul.mubr.f32.gmra.mrb[0].mxu0 %v179
    %v1022 = vpop.f32.mrb[0].mxu0
    %v1023 = vadd.f32 %v939, %v1022
    %v1024 = vpop.f32.mrb[0].mxu0
    %1025 = vmatprep.mubr.f32.mxu0 0.0
    %1026 = vmatmul.mubr.f32.gmra.mrb[0].mxu0 %v182
    %v1027 = vpop.f32.mrb[0].mxu0
    %v1028 = vadd.f32 %v941, %v1027
    %v1029 = vpop.f32.mrb[0].mxu0
    %1030 = vdwg.mxu0
    %v1031 = vxor.u32 %v1013, 2147483648
    %v1032 = vxor.u32 %v1018, 2147483648
    %v1033 = vxor.u32 %v1023, 2147483648
    %v1034 = vmul.f32 %v1031, 1.442695
    %v1035 = vpow.pop %v1034
    %v1036 = vmul.f32 %v1032, 1.442695
    %v1037 = vpow.pop %v1036
    %v1038 = vmul.f32 %v1033, 1.442695
    %v1039 = vpow.pop %v1038
    %v1040 = vadd.f32 %v1035, 1.0
    %v1041 = vadd.f32 %v1037, 1.0
    %v1042 = vadd.f32 %v1039, 1.0
    %v1043 = vrcp.pop %v1040
    %v1044 = vmul.f32 1.0, %v1043
    %v1045 = vrcp.pop %v1041
    %v1046 = vmul.f32 1.0, %v1045
    %v1047 = vrcp.pop %v1042
    %v1048 = vmul.f32 1.0, %v1047
    %v1049 = vtanh.pop %v1028
    %v1050 = vmul.f32 %v1046, %v925
    %v1051 = vmul.f32 %v1044, %v1049
    %v1052 = vadd.f32 %v1050, %v1051
    %v1053 = vtanh.pop %v1052
    %v1054 = vmul.f32 %v1048, %v1053
    %1056 = vrot.lane.b32.xlu0 %v1054, 6
    %v1057 = vpop.permute.xlu0 %1056
    %vm1059 = vcmask 56368
    %1060 = vst.msk [vmem:[#allocation2] sm:$0xff] %vm1059, %v1057
    %1061 = vrot.lane.b32.xlu0 %v147, 121
    %v1062 = vpop.permute.xlu0 %1061
    %1063 = vrot.lane.b32.xlu0 %v152, 121
    %v1064 = vpop.permute.xlu0 %1063
    %1065 = vrot.lane.b32.xlu0 %v157, 121
    %v1066 = vpop.permute.xlu0 %1065
    %1067 = vrot.lane.b32.xlu0 %v162, 121
    %v1068 = vpop.permute.xlu0 %1067
    %1073 = vmatprep.subr.mxu0 0.0
    %1074 = vmatpush1.msra.mxu0 %v1054
    %1075 = vmatprep.subr.mxu0 0.0
    %1076 = vmatpush1.msra.mxu0 0.0
    %1077 = vmatprep.subr.mxu0 0.0
    %1078 = vmatpush1.msra.mxu0 0.0
    %1079 = vmatprep.subr.mxu0 0.0
    %1080 = vmatpush1.msra.mxu0 0.0
    %1081 = vmatprep.subr.mxu0 0.0
    %1082 = vmatpush1.msra.mxu0 0.0
    %1083 = vmatprep.subr.mxu0 0.0
    %1084 = vmatpush1.msra.mxu0 0.0
    %1085 = vmatprep.subr.mxu0 0.0
    %1086 = vmatpush1.msra.mxu0 0.0
    %1087 = vmatprep.subr.mxu0 0.0
    %1088 = vmatpush1.msra.mxu0 0.0
    %1089 = vmatprep.subr.mxu0 0.0
    %1090 = vmatpush1.msra.mxu0 0.0
    %1091 = vmatprep.subr.mxu0 0.0
    %1092 = vmatpush1.msra.mxu0 0.0
    %1093 = vmatprep.subr.mxu0 0.0
    %1094 = vmatpush1.msra.mxu0 0.0
    %1095 = vmatprep.subr.mxu0 0.0
    %1096 = vmatpush1.msra.mxu0 0.0
    %1097 = vmatprep.subr.mxu0 0.0
    %1098 = vmatpush1.msra.mxu0 0.0
    %1099 = vmatprep.subr.mxu0 0.0
    %1100 = vmatpush1.msra.mxu0 0.0
    %1101 = vmatprep.subr.mxu0 0.0
    %1102 = vmatpush1.msra.mxu0 0.0
    %1103 = vmatprep.subr.mxu0 0.0
    %1104 = vmatpush1.msra.mxu0 0.0
    %1105 = vmatprep.subr.mxu0 0.0
    %1106 = vmatpush1.msra.mxu0 0.0
    %1107 = vmatprep.subr.mxu0 0.0
    %1108 = vmatpush1.msra.mxu0 0.0
    %1109 = vmatprep.subr.mxu0 0.0
    %1110 = vmatpush1.msra.mxu0 0.0
    %1111 = vmatprep.subr.mxu0 0.0
    %1112 = vmatpush1.msra.mxu0 0.0
    %1113 = vmatprep.subr.mxu0 0.0
    %1114 = vmatpush1.msra.mxu0 0.0
    %1115 = vmatprep.subr.mxu0 0.0
    %1116 = vmatpush1.msra.mxu0 0.0
    %1117 = vmatprep.subr.mxu0 0.0
    %1118 = vmatpush1.msra.mxu0 0.0
    %1119 = vmatprep.subr.mxu0 0.0
    %1120 = vmatpush1.msra.mxu0 0.0
    %1121 = vmatprep.subr.mxu0 0.0
    %1122 = vmatpush1.msra.mxu0 0.0
    %1123 = vmatprep.subr.mxu0 0.0
    %1124 = vmatpush1.msra.mxu0 0.0
    %1125 = vmatprep.subr.mxu0 0.0
    %1126 = vmatpush1.msra.mxu0 0.0
    %1127 = vmatprep.subr.mxu0 0.0
    %1128 = vmatpush1.msra.mxu0 0.0
    %1129 = vmatprep.subr.mxu0 0.0
    %1130 = vmatpush1.msra.mxu0 0.0
    %1131 = vmatprep.subr.mxu0 0.0
    %1132 = vmatpush1.msra.mxu0 0.0
    %1133 = vmatprep.subr.mxu0 0.0
    %1134 = vmatpush1.msra.mxu0 0.0
    %1135 = vmatprep.subr.mxu0 0.0
    %1136 = vmatpush1.msra.mxu0 0.0
    %1137 = vmatprep.mubr.f32.mxu0 0.0
    %1138 = vmatmul.mubr.f32.gmra.mrb[0].mxu0 %v173
    %v1139 = vpop.f32.mrb[0].mxu0
    %v1140 = vadd.f32 %v1062, %v1139
    %v1141 = vpop.f32.mrb[0].mxu0
    %1142 = vmatprep.mubr.f32.mxu0 0.0
    %1143 = vmatmul.mubr.f32.gmra.mrb[0].mxu0 %v176
    %v1144 = vpop.f32.mrb[0].mxu0
    %v1145 = vadd.f32 %v1064, %v1144
    %v1146 = vpop.f32.mrb[0].mxu0
    %1147 = vmatprep.mubr.f32.mxu0 0.0
    %1148 = vmatmul.mubr.f32.gmra.mrb[0].mxu0 %v179
    %v1149 = vpop.f32.mrb[0].mxu0
    %v1150 = vadd.f32 %v1066, %v1149
    %v1151 = vpop.f32.mrb[0].mxu0
    %1152 = vmatprep.mubr.f32.mxu0 0.0
    %1153 = vmatmul.mubr.f32.gmra.mrb[0].mxu0 %v182
    %v1154 = vpop.f32.mrb[0].mxu0
    %v1155 = vadd.f32 %v1068, %v1154
    %v1156 = vpop.f32.mrb[0].mxu0
    %1157 = vdwg.mxu0
    %v1158 = vxor.u32 %v1140, 2147483648
    %v1159 = vxor.u32 %v1145, 2147483648
    %v1160 = vxor.u32 %v1150, 2147483648
    %v1161 = vmul.f32 %v1158, 1.442695
    %v1162 = vpow.pop %v1161
    %v1163 = vmul.f32 %v1159, 1.442695
    %v1164 = vpow.pop %v1163
    %v1165 = vmul.f32 %v1160, 1.442695
    %v1166 = vpow.pop %v1165
    %v1167 = vadd.f32 %v1162, 1.0
    %v1168 = vadd.f32 %v1164, 1.0
    %v1169 = vadd.f32 %v1166, 1.0
    %v1170 = vrcp.pop %v1167
    %v1171 = vmul.f32 1.0, %v1170
    %v1172 = vrcp.pop %v1168
    %v1173 = vmul.f32 1.0, %v1172
    %v1174 = vrcp.pop %v1169
    %v1175 = vmul.f32 1.0, %v1174
    %v1176 = vtanh.pop %v1155
    %v1177 = vmul.f32 %v1173, %v1052
    %v1178 = vmul.f32 %v1171, %v1176
    %v1179 = vadd.f32 %v1177, %v1178
    %v1180 = vtanh.pop %v1179
    %v1181 = vmul.f32 %v1175, %v1180
    %1183 = vrot.lane.b32.xlu0 %v1181, 7
    %v1184 = vpop.permute.xlu0 %1183
    %vm1186 = vcmask 64568
    %1187 = vst.msk [vmem:[#allocation2] sm:$0xff] %vm1186, %v1184
    %v1188 = vld [vmem:[%s6] sm:$0x7]
    %v1189 = vld [vmem:[#allocation2] sm:$0xff]
    %v1190 = vld [vmem:[%s7] sm:$0x7]
    %1192 = vset.pattern.permute.xlu0 0
    %1193 = vperm.xlu0 %1192, %v1190
    %v1194 = vpop.permute.xlu0 %1193
    %v1197 = vsel %vm171, %v1188, 0
    %1199 = vmatprep.subr.mxu0 0.0
    %1200 = vmatpush1.msra.mxu0 %v1189
    %1201 = vmatprep.subr.mxu0 0.0
    %1202 = vmatpush1.msra.mxu0 0.0
    %1203 = vmatprep.subr.mxu0 0.0
    %1204 = vmatpush1.msra.mxu0 0.0
    %1205 = vmatprep.subr.mxu0 0.0
    %1206 = vmatpush1.msra.mxu0 0.0
    %1207 = vmatprep.subr.mxu0 0.0
    %1208 = vmatpush1.msra.mxu0 0.0
    %1209 = vmatprep.subr.mxu0 0.0
    %1210 = vmatpush1.msra.mxu0 0.0
    %1211 = vmatprep.subr.mxu0 0.0
    %1212 = vmatpush1.msra.mxu0 0.0
    %1213 = vmatprep.subr.mxu0 0.0
    %1214 = vmatpush1.msra.mxu0 0.0
    %1215 = vmatprep.subr.mxu0 0.0
    %1216 = vmatpush1.msra.mxu0 0.0
    %1217 = vmatprep.subr.mxu0 0.0
    %1218 = vmatpush1.msra.mxu0 0.0
    %1219 = vmatprep.subr.mxu0 0.0
    %1220 = vmatpush1.msra.mxu0 0.0
    %1221 = vmatprep.subr.mxu0 0.0
    %1222 = vmatpush1.msra.mxu0 0.0
    %1223 = vmatprep.subr.mxu0 0.0
    %1224 = vmatpush1.msra.mxu0 0.0
    %1225 = vmatprep.subr.mxu0 0.0
    %1226 = vmatpush1.msra.mxu0 0.0
    %1227 = vmatprep.subr.mxu0 0.0
    %1228 = vmatpush1.msra.mxu0 0.0
    %1229 = vmatprep.subr.mxu0 0.0
    %1230 = vmatpush1.msra.mxu0 0.0
    %1231 = vmatprep.subr.mxu0 0.0
    %1232 = vmatpush1.msra.mxu0 0.0
    %1233 = vmatprep.subr.mxu0 0.0
    %1234 = vmatpush1.msra.mxu0 0.0
    %1235 = vmatprep.subr.mxu0 0.0
    %1236 = vmatpush1.msra.mxu0 0.0
    %1237 = vmatprep.subr.mxu0 0.0
    %1238 = vmatpush1.msra.mxu0 0.0
    %1239 = vmatprep.subr.mxu0 0.0
    %1240 = vmatpush1.msra.mxu0 0.0
    %1241 = vmatprep.subr.mxu0 0.0
    %1242 = vmatpush1.msra.mxu0 0.0
    %1243 = vmatprep.subr.mxu0 0.0
    %1244 = vmatpush1.msra.mxu0 0.0
    %1245 = vmatprep.subr.mxu0 0.0
    %1246 = vmatpush1.msra.mxu0 0.0
    %1247 = vmatprep.subr.mxu0 0.0
    %1248 = vmatpush1.msra.mxu0 0.0
    %1249 = vmatprep.subr.mxu0 0.0
    %1250 = vmatpush1.msra.mxu0 0.0
    %1251 = vmatprep.subr.mxu0 0.0
    %1252 = vmatpush1.msra.mxu0 0.0
    %1253 = vmatprep.subr.mxu0 0.0
    %1254 = vmatpush1.msra.mxu0 0.0
    %1255 = vmatprep.subr.mxu0 0.0
    %1256 = vmatpush1.msra.mxu0 0.0
    %1257 = vmatprep.subr.mxu0 0.0
    %1258 = vmatpush1.msra.mxu0 0.0
    %1259 = vmatprep.subr.mxu0 0.0
    %1260 = vmatpush1.msra.mxu0 0.0
    %1261 = vmatprep.subr.mxu0 0.0
    %1262 = vmatpush1.msra.mxu0 0.0
    %1263 = vmatprep.mubr.f32.mxu0 0.0
    %1264 = vmatmul.mubr.f32.gmra.mrb[0].mxu0 %v1197
    %v1265 = vpop.f32.mrb[0].mxu0
    %v1266 = vadd.f32 %v1194, %v1265
    %v1267 = vpop.f32.mrb[0].mxu0
    %1268 = vdwg.mxu0
    %v1269 = vxor.u32 %v1266, 2147483648
    %v1270 = vmul.f32 %v1269, 1.442695
    %v1271 = vpow.pop %v1270
    %v1272 = vadd.f32 %v1271, 1.0
    %v1273 = vrcp.pop %v1272
    %v1274 = vmul.f32 1.0, %v1273
    %vm1275 = vcmask 59392
    %1276 = vst.msk [vmem:[#allocation3] sm:$0x7] %vm1275, %v1274
    %1277 = vst.msk [vmem:[%s9] sm:$0xff] %vm293, %v1181
    %1278 = vst.msk [vmem:[%s10] sm:$0xff] %vm293, %v1179
    // Predicated region
    $region34: #{lstm_forward_seq.1} parent=1 // pred_check
      _
    $region35: #{lstm_forward_seq.1} parent=1 // pred_check_branch
      %1280 = sbr.rel (0) target = $region37
    $region36: #{lstm_forward_seq.1} parent=1 // pred_region
      %s1282 = ssub.s32 64, 64
      %1283 = vsyncadd [#allocation4], %s1282
      %s1285 = sshll.u32 [#allocation3], 4
      %s1286 = int_to_ptr.vmem [resolvable:$true] %s1285
      %1288 = dma.vmem_to_hbm [thread:$0]  %s1286, 64, %s8, [#allocation4]
    $region37: #{lstm_forward_seq.1} parent=1 // pred_fallthru
      _
    // Predicated region
    $region38: #{lstm_forward_seq.1} parent=1 // pred_check
      _
    $region39: #{lstm_forward_seq.1} parent=1 // pred_check_branch
      %1290 = sbr.rel (0) target = $region41
    $region40: #{lstm_forward_seq.1} parent=1 // pred_region
      _
    $region41: #{lstm_forward_seq.1} parent=1 // pred_fallthru
      _
    // Predicated region
    $region42: #{lstm_forward_seq.1} parent=1 // pred_check
      _
    $region43: #{lstm_forward_seq.1} parent=1 // pred_check_branch
      %1292 = sbr.rel (0) target = $region45
    $region44: #{lstm_forward_seq.1} parent=1 // pred_region
      _
    $region45: #{lstm_forward_seq.1} parent=1 // pred_fallthru
      _
    // Predicated region
    $region46: #{lstm_forward_seq.1} parent=1 // pred_check
      _
    $region47: #{lstm_forward_seq.1} parent=1 // pred_check_branch
      %1294 = sbr.rel (0) target = $region49
    $region48: #{lstm_forward_seq.1} parent=1 // pred_region
      %1295 = dma.done [#allocation4], 64
    $region49: #{lstm_forward_seq.1} parent=1 // pred_fallthru
      _
    // Predicated region
    $region50: #{lstm_forward_seq.1} parent=1 // pred_check
      _
    $region51: #{lstm_forward_seq.1} parent=1 // pred_check_branch
      %1297 = sbr.rel (0) target = $region53
    $region52: #{lstm_forward_seq.1} parent=1 // pred_region
      _
    $region53: #{lstm_forward_seq.1} parent=1 // pred_fallthru
      _
    // Predicated region
    $region54: #{lstm_forward_seq.1} parent=1 // pred_check
      _
    $region55: #{lstm_forward_seq.1} parent=1 // pred_check_branch
      %1299 = sbr.rel (0) target = $region57
    $region56: #{lstm_forward_seq.1} parent=1 // pred_region
      _
    $region57: #{lstm_forward_seq.1} parent=1 // pred_fallthru
      _
    %1300 = vsyncpa [#allocation4], 1

</llo_original>
